<compile_context>
chip_gen: v5e
topology: v5e:2x2
jax: 0.10.0
libtpu: 0.0.40
codegen_flags: <defaults>
</compile_context>

<pallas_src>
import functools

import jax
import jax.numpy as jnp
from jax.experimental import pallas as pl
from jax.experimental.pallas import tpu as pltpu


def _cdiv(a, b):
    return (a + b - 1) // b


def _gdl_kernel(pred_ref, target_ref, mask_x_ref, mask_y_ref, out_ref,
                *, W, alpha, compute_dtype):
    # pred_ref / target_ref: (TB, Lp) blocks in the input dtype.
    p = pred_ref[...]
    t = target_ref[...]
    if p.dtype != compute_dtype:
        p = p.astype(compute_dtype)
        t = t.astype(compute_dtype)

    # H-direction diff ("dx" in the torch code): lane offset of W in the
    # flattened image.  roll(x, s, axis)[..., c] == x[..., (c - s) % Lp].
    pred_dx = jnp.abs(p - pltpu.roll(p, W, 1))
    targ_dx = jnp.abs(t - pltpu.roll(t, W, 1))
    # W-direction diff ("dy"): lane offset of 1.
    pred_dy = jnp.abs(p - pltpu.roll(p, 1, 1))
    targ_dy = jnp.abs(t - pltpu.roll(t, 1, 1))

    if alpha == 2:
        # |x|^2 == x^2: skip the outer abs entirely.
        dx = pred_dx - targ_dx
        dy = pred_dy - targ_dy
        gdx = dx * dx
        gdy = dy * dy
    else:
        gdx = jnp.abs(pred_dx - targ_dx)
        gdy = jnp.abs(pred_dy - targ_dy)
        if alpha == 1:
            pass
        elif isinstance(alpha, int) and 3 <= alpha <= 8:
            # Repeated multiplication: avoids the exp/log chain on the single
            # EUP slot for small integer alphas.
            bx, by = gdx, gdy
            for _ in range(alpha - 1):
                gdx = gdx * bx
                gdy = gdy * by
        else:
            # TODO(synk): general pow lowers to exp(alpha*log(x)) on the EUP;
            # exactly-zero differences nan for alpha <= 0 (same as torch).
            gdx = gdx ** alpha
            gdy = gdy ** alpha

    # Masked lane reductions on the (otherwise idle) MXU: (TB,Lp) @ (Lp,1)
    # against the 0/1 boundary-mask column, accumulated in f32.
    prec = jax.lax.Precision.HIGHEST if compute_dtype == jnp.float32 else None
    sx = jnp.sum(jnp.dot(gdx, mask_x_ref[...],
                         precision=prec, preferred_element_type=jnp.float32))
    sy = jnp.sum(jnp.dot(gdy, mask_y_ref[...],
                         precision=prec, preferred_element_type=jnp.float32))

    # One full-vreg (8, 128) partial-sum slab per block: x-sum in lane 0,
    # y-sum in lane 1 of sublane 0, zeros elsewhere (unmasked full store).
    sub = jax.lax.broadcasted_iota(jnp.int32, (8, 128), 0)
    lane = jax.lax.broadcasted_iota(jnp.int32, (8, 128), 1)
    out_ref[...] = jnp.where(
        (sub == 0) & (lane == 0), sx,
        jnp.where((sub == 0) & (lane == 1), sy, jnp.float32(0.0)))


def gradient_difference_loss(pred, target, alpha=1):
    """Pallas implementation of CustomGradientDifferenceLoss.forward (mask=None).

    pred, target: (N, C, H, W) arrays (float dtype).  Returns f32 scalar.
    NOTE: H == 1 (or W == 1) gives an empty grad_diff mean -> nan, like torch.
    """
    # TODO(synk): optional `mask` argument (masked sums / mask normalisation)
    # not implemented; the reference module defaults to mask=None.
    assert pred.shape == target.shape and pred.ndim == 4
    N, C, H, W = pred.shape
    B = N * C
    L = H * W
    in_dtype = pred.dtype

    # bf16 inputs keep the finite differences in bf16 (v6e/v7x: halves vreg &
    # roll work); everything else computes in f32.  Accumulation is always f32.
    compute_dtype = jnp.bfloat16 if in_dtype == jnp.bfloat16 else jnp.float32

    # ----- generation-aware tiling / scoped-VMEM budget ---------------------
    itemsize = jnp.dtype(in_dtype).itemsize
    try:
        vmem_cap = int(getattr(pltpu.get_tpu_info(), "vmem_capacity_bytes", 0))
    except Exception:
        vmem_cap = 0
    if vmem_cap >= 128 * 1024 * 1024:          # v5e / v6e: 128 MiB physical VMEM
        tile_cap_bytes = 4 * 1024 * 1024
        vmem_limit = 64 * 1024 * 1024
    else:                                       # v7x (64 MiB) or unknown: stay safe
        tile_cap_bytes = 2 * 1024 * 1024
        vmem_limit = 32 * 1024 * 1024

    # ----- lane padding: keep rolls / loads / stores on full 128-lane vregs --
    Lp = max(128, _cdiv(L, 128) * 128)

    # ----- fixed, sublane-aligned batch tile; pad B with zero rows -----------
    align = 16 if compute_dtype == jnp.bfloat16 else 8
    row_bytes = Lp * itemsize
    max_tb = max(align, (tile_cap_bytes // row_bytes) // align * align)
    TB = min(max_tb, align * _cdiv(B, align))
    num_blocks = _cdiv(B, TB)
    # v7x megacore: prefer >= 2 (even) blocks on the "parallel" grid axis.
    if TB > align and (num_blocks == 1 or num_blocks % 2 == 1):
        tb_new = max(align, align * _cdiv(_cdiv(B, num_blocks + 1), align))
        nb_new = _cdiv(B, tb_new)
        if nb_new > num_blocks:
            TB, num_blocks = tb_new, nb_new
    B_pad = num_blocks * TB

    p2 = pred.reshape(B, L)
    t2 = target.reshape(B, L)
    if B_pad != B or Lp != L:
        pad = ((0, B_pad - B), (0, Lp - L))
        p2 = jnp.pad(p2, pad)   # zero rows / lanes contribute exactly 0
        t2 = jnp.pad(t2, pad)

    # Boundary masks along the flattened lane axis, as (Lp, 1) columns for the
    # MXU masked reduce; padded lanes (>= L) are zeroed as well.
    lane = jnp.arange(Lp, dtype=jnp.int32)
    valid = lane < L
    mask_x = ((lane >= W) & valid).astype(compute_dtype).reshape(Lp, 1)        # h >= 1
    mask_y = (((lane % W) >= 1) & valid).astype(compute_dtype).reshape(Lp, 1)  # w >= 1

    kernel = functools.partial(_gdl_kernel, W=W, alpha=alpha,
                               compute_dtype=compute_dtype)

    block_sums = pl.pallas_call(
        kernel,
        out_shape=jax.ShapeDtypeStruct((num_blocks * 8, 128), jnp.float32),
        grid=(num_blocks,),
        in_specs=[
            pl.BlockSpec((TB, Lp), lambda i: (i, 0)),
            pl.BlockSpec((TB, Lp), lambda i: (i, 0)),
            pl.BlockSpec((Lp, 1), lambda i: (0, 0)),
            pl.BlockSpec((Lp, 1), lambda i: (0, 0)),
        ],
        out_specs=pl.BlockSpec((8, 128), lambda i: (i, 0)),
        compiler_params=pltpu.CompilerParams(
            dimension_semantics=("parallel",),
            vmem_limit_bytes=vmem_limit,
        ),
    )(p2, t2, mask_x, mask_y)

    # One contiguous reduce over the whole slab, then read lanes 0 / 1.
    col = jnp.sum(block_sums, axis=0)
    sum_x = col[0]
    sum_y = col[1]
    n_x = B * (H - 1) * W   # number of elements of grad_diff_x
    n_y = B * H * (W - 1)   # number of elements of grad_diff_y
    return sum_x / n_x + sum_y / n_y


def _reference_loss(pred, target, alpha=1):
    pred_dx = jnp.abs(pred[:, :, 1:, :] - pred[:, :, :-1, :])
    pred_dy = jnp.abs(pred[:, :, :, 1:] - pred[:, :, :, :-1])
    targ_dx = jnp.abs(target[:, :, 1:, :] - target[:, :, :-1, :])
    targ_dy = jnp.abs(target[:, :, :, 1:] - target[:, :, :, :-1])
    gdx = jnp.abs(pred_dx - targ_dx) ** alpha
    gdy = jnp.abs(pred_dy - targ_dy) ** alpha
    return jnp.mean(gdx) + jnp.mean(gdy)


if __name__ == "__main__":
    key = jax.random.PRNGKey(0)
    k1, k2 = jax.random.split(key)
    N, C, H, W = 2, 4, 16, 16
    pred = jax.random.normal(k1, (N, C, H, W), dtype=jnp.float32)
    target = jax.random.normal(k2, (N, C, H, W), dtype=jnp.float32)

    # f32 path, including the integer-alpha fast paths.
    for a in (1, 2, 3):
        loss = jax.block_until_ready(gradient_difference_loss(pred, target, alpha=a))
        ref = jax.block_until_ready(_reference_loss(pred, target, alpha=a))
        assert jnp.allclose(loss, ref, rtol=1e-5, atol=1e-5), (a, loss, ref)

    # Non-multiple-of-128 spatial size exercises the lane/row padding paths.
    p_s = jax.random.normal(k1, (2, 3, 12, 12), dtype=jnp.float32)
    t_s = jax.random.normal(k2, (2, 3, 12, 12), dtype=jnp.float32)
    loss_s = jax.block_until_ready(gradient_difference_loss(p_s, t_s, alpha=1))
    ref_s = jax.block_until_ready(_reference_loss(p_s, t_s, alpha=1))
    assert jnp.allclose(loss_s, ref_s, rtol=1e-5, atol=1e-5), (loss_s, ref_s)

    # bf16 inputs: finite differences stay in bf16 (f32 accumulation), so use
    # a wider tolerance against the f32 reference.
    p_bf = pred.astype(jnp.bfloat16)
    t_bf = target.astype(jnp.bfloat16)
    loss_bf = jax.block_until_ready(gradient_difference_loss(p_bf, t_bf, alpha=1))
    ref_bf = jax.block_until_ready(
        _reference_loss(p_bf.astype(jnp.float32), t_bf.astype(jnp.float32), alpha=1))
    assert jnp.allclose(loss_bf, ref_bf, rtol=5e-2, atol=5e-2), (loss_bf, ref_bf)

    print("KERNEL_OK")
</pallas_src>

<mosaic_0001>
module attributes {stable_mosaic.version = 11 : i64} {
  func.func @_gdl_kernel(%arg0: i32, %arg1: memref<8x256xf32, #tpu.memory_space<vmem>>, %arg2: memref<8x256xf32, #tpu.memory_space<vmem>>, %arg3: memref<256x1xf32, #tpu.memory_space<vmem>>, %arg4: memref<256x1xf32, #tpu.memory_space<vmem>>, %arg5: memref<8x128xf32, #tpu.memory_space<vmem>>) attributes {dimension_semantics = [#tpu.dimension_semantics<parallel>], iteration_bounds = array<i64: 1>, scalar_prefetch = 0 : i64, scratch_operands = 0 : i64, tpu.core_type = #tpu.core_type<tc>, window_params = [{transform_indices = @transform_0, window_bounds = array<i64: 8, 256>}, {transform_indices = @transform_1, window_bounds = array<i64: 8, 256>}, {pipeline_mode = #tpu.pipeline_mode<synchronous>, transform_indices = @transform_2, window_bounds = array<i64: 256, 1>}, {pipeline_mode = #tpu.pipeline_mode<synchronous>, transform_indices = @transform_3, window_bounds = array<i64: 256, 1>}, {transform_indices = @transform_4, window_bounds = array<i64: 8, 128>}]} {
    %c0 = arith.constant 0 : index
    %c0_0 = arith.constant 0 : index
    %0 = vector.load %arg1[%c0, %c0_0] : memref<8x256xf32, #tpu.memory_space<vmem>>, vector<8x256xf32>
    %c0_1 = arith.constant 0 : index
    %c0_2 = arith.constant 0 : index
    %1 = vector.load %arg2[%c0_1, %c0_2] : memref<8x256xf32, #tpu.memory_space<vmem>>, vector<8x256xf32>
    %c16_i32 = arith.constant 16 : i32
    %2 = tpu.dynamic_rotate %0 by %c16_i32 dim 1 : vector<8x256xf32>, i32 -> vector<8x256xf32>
    %3 = arith.subf %0, %2 : vector<8x256xf32>
    %4 = math.absf %3 : vector<8x256xf32>
    %c16_i32_3 = arith.constant 16 : i32
    %5 = tpu.dynamic_rotate %1 by %c16_i32_3 dim 1 : vector<8x256xf32>, i32 -> vector<8x256xf32>
    %6 = arith.subf %1, %5 : vector<8x256xf32>
    %7 = math.absf %6 : vector<8x256xf32>
    %c1_i32 = arith.constant 1 : i32
    %8 = tpu.dynamic_rotate %0 by %c1_i32 dim 1 : vector<8x256xf32>, i32 -> vector<8x256xf32>
    %9 = arith.subf %0, %8 : vector<8x256xf32>
    %10 = math.absf %9 : vector<8x256xf32>
    %c1_i32_4 = arith.constant 1 : i32
    %11 = tpu.dynamic_rotate %1 by %c1_i32_4 dim 1 : vector<8x256xf32>, i32 -> vector<8x256xf32>
    %12 = arith.subf %1, %11 : vector<8x256xf32>
    %13 = math.absf %12 : vector<8x256xf32>
    %14 = arith.subf %4, %7 : vector<8x256xf32>
    %15 = math.absf %14 : vector<8x256xf32>
    %16 = arith.subf %10, %13 : vector<8x256xf32>
    %17 = math.absf %16 : vector<8x256xf32>
    %c0_5 = arith.constant 0 : index
    %c0_6 = arith.constant 0 : index
    %18 = vector.load %arg3[%c0_5, %c0_6] : memref<256x1xf32, #tpu.memory_space<vmem>>, vector<256x1xf32>
    %cst = arith.constant dense<0.000000e+00> : vector<8x1xf32>
    %19 = tpu.matmul %15, %18, %cst {dimension_numbers = #tpu.dot_dimension_numbers<[1], [0], [0], [1], [0, 0, 1, 1], [], []>, precision = #tpu.contract_precision<fp32>} : vector<8x256xf32>, vector<256x1xf32>, vector<8x1xf32> -> vector<8x1xf32>
    %20 = vector.shape_cast %19 : vector<8x1xf32> to vector<1x8x1xf32>
    %cst_7 = arith.constant dense<0.000000e+00> : vector<1xf32>
    %21 = vector.multi_reduction <add>, %20, %cst_7 [1, 2] : vector<1x8x1xf32> to vector<1xf32>
    %22 = vector.shape_cast %21 : vector<1xf32> to vector<1x1x1xf32>
    %23 = vector.extract %22[0, 0, 0] : f32 from vector<1x1x1xf32>
    %c0_8 = arith.constant 0 : index
    %c0_9 = arith.constant 0 : index
    %24 = vector.load %arg4[%c0_8, %c0_9] : memref<256x1xf32, #tpu.memory_space<vmem>>, vector<256x1xf32>
    %cst_10 = arith.constant dense<0.000000e+00> : vector<8x1xf32>
    %25 = tpu.matmul %17, %24, %cst_10 {dimension_numbers = #tpu.dot_dimension_numbers<[1], [0], [0], [1], [0, 0, 1, 1], [], []>, precision = #tpu.contract_precision<fp32>} : vector<8x256xf32>, vector<256x1xf32>, vector<8x1xf32> -> vector<8x1xf32>
    %26 = vector.shape_cast %25 : vector<8x1xf32> to vector<1x8x1xf32>
    %cst_11 = arith.constant dense<0.000000e+00> : vector<1xf32>
    %27 = vector.multi_reduction <add>, %26, %cst_11 [1, 2] : vector<1x8x1xf32> to vector<1xf32>
    %28 = vector.shape_cast %27 : vector<1xf32> to vector<1x1x1xf32>
    %29 = vector.extract %28[0, 0, 0] : f32 from vector<1x1x1xf32>
    %30 = tpu.iota {dimensions = array<i32: 0>} : vector<8x128xi32>
    %31 = tpu.iota {dimensions = array<i32: 1>} : vector<8x128xi32>
    %c0_i32 = arith.constant 0 : i32
    %32 = vector.broadcast %c0_i32 : i32 to vector<8x128xi32>
    %33 = arith.cmpi eq, %30, %32 : vector<8x128xi32>
    %c0_i32_12 = arith.constant 0 : i32
    %34 = vector.broadcast %c0_i32_12 : i32 to vector<8x128xi32>
    %35 = arith.cmpi eq, %31, %34 : vector<8x128xi32>
    %36 = arith.andi %33, %35 : vector<8x128xi1>
    %c0_i32_13 = arith.constant 0 : i32
    %37 = vector.broadcast %c0_i32_13 : i32 to vector<8x128xi32>
    %38 = arith.cmpi eq, %30, %37 : vector<8x128xi32>
    %c1_i32_14 = arith.constant 1 : i32
    %39 = vector.broadcast %c1_i32_14 : i32 to vector<8x128xi32>
    %40 = arith.cmpi eq, %31, %39 : vector<8x128xi32>
    %41 = arith.andi %38, %40 : vector<8x128xi1>
    %cst_15 = arith.constant 0.000000e+00 : f32
    %42 = vector.broadcast %29 : f32 to vector<8x128xf32>
    %43 = vector.broadcast %cst_15 : f32 to vector<8x128xf32>
    %44 = arith.select %41, %42, %43 : vector<8x128xi1>, vector<8x128xf32>
    %45 = vector.broadcast %23 : f32 to vector<8x128xf32>
    %46 = arith.select %36, %45, %44 : vector<8x128xi1>, vector<8x128xf32>
    %c0_16 = arith.constant 0 : index
    %c0_17 = arith.constant 0 : index
    %47 = vector.load %arg5[%c0_16, %c0_17] : memref<8x128xf32, #tpu.memory_space<vmem>>, vector<8x128xf32>
    tpu.vector_store %arg5[%c0_16, %c0_17], %46 {strides = array<i32>} : memref<8x128xf32, #tpu.memory_space<vmem>>, vector<8x128xf32>,
    return
  }
  func.func @transform_0(%arg0: i32) -> (i32, i32) {
    %c0_i32 = arith.constant 0 : i32
    %c0_i32_0 = arith.constant 0 : i32
    return %arg0, %c0_i32 : i32, i32
  }
  func.func @transform_1(%arg0: i32) -> (i32, i32) {
    %c0_i32 = arith.constant 0 : i32
    %c0_i32_0 = arith.constant 0 : i32
    return %arg0, %c0_i32 : i32, i32
  }
  func.func @transform_2(%arg0: i32) -> (i32, i32) {
    %c0_i32 = arith.constant 0 : i32
    %c0_i32_0 = arith.constant 0 : i32
    %c0_i32_1 = arith.constant 0 : i32
    return %c0_i32, %c0_i32_0 : i32, i32
  }
  func.func @transform_3(%arg0: i32) -> (i32, i32) {
    %c0_i32 = arith.constant 0 : i32
    %c0_i32_0 = arith.constant 0 : i32
    %c0_i32_1 = arith.constant 0 : i32
    return %c0_i32, %c0_i32_0 : i32, i32
  }
  func.func @transform_4(%arg0: i32) -> (i32, i32) {
    %c0_i32 = arith.constant 0 : i32
    %c0_i32_0 = arith.constant 0 : i32
    return %arg0, %c0_i32 : i32, i32
  }
}

</mosaic_0001>

<llo_original>
// kernel: tpu_custom_call.1
$region0: #{tpu_custom_call.1}
  #allocation0 [shape = 'u32[]', space=smem, size = 0x4, offset = 0x4, fixed_abs, tag = 'smem constant byte address 0x4 - core index']
  #allocation1 [shape = 'u32[72,128]{1,0:T(1,128)}', space=vmem, size = 0x9000, scoped, tag = 'internal scratch']
  %s0 = inlined_call_operand.vmem [shape: f32[8,256], index: 0, kind: input, shape index: {}]
  %s1 = inlined_call_operand.vmem [shape: f32[8,256], index: 1, kind: input, shape index: {}]
  %s2 = inlined_call_operand.vmem [shape: f32[256,1], index: 2, kind: input, shape index: {}]
  %s3 = inlined_call_operand.vmem [shape: f32[256,1], index: 3, kind: input, shape index: {}]
  %s4 = inlined_call_operand.hbm [shape: f32[8,128], index: 4, kind: output, shape index: {}]
  %s5 = sld [smem:[#allocation0]]
  $region26: #{tpu_custom_call.1} parent=0
    _
  %s7 = ssub.s32 1, %s5
  %s8 = scalar_select 0, %s7, %s5
  $region1: #{tpu_custom_call.1} parent=0
    #allocation2 [shape = 'u8[4096]{0}', space=vmem, size = 0x1000, scoped, tag = 'output window, operand 0, single buffered']
    #allocation3 [shape = 's32[1]{0}', space=sflag, size = 0x4, scoped, tag = 'scoped memory for tpu_custom_call.1']
    %9 = vsyncpa [#allocation3], 0
    // Predicated region
    $region2: #{tpu_custom_call.1} parent=1 // pred_check
      _
    $region3: #{tpu_custom_call.1} parent=1 // pred_check_branch
      %11 = sbr.rel (0) target = $region5
    $region4: #{tpu_custom_call.1} parent=1 // pred_region
      _
    $region5: #{tpu_custom_call.1} parent=1 // pred_fallthru
      _
    // Predicated region
    $region6: #{tpu_custom_call.1} parent=1 // pred_check
      _
    $region7: #{tpu_custom_call.1} parent=1 // pred_check_branch
      %13 = sbr.rel (0) target = $region9
    $region8: #{tpu_custom_call.1} parent=1 // pred_region
      _
    $region9: #{tpu_custom_call.1} parent=1 // pred_fallthru
      _
    // Predicated region
    $region10: #{tpu_custom_call.1} parent=1 // pred_check
      _
    $region11: #{tpu_custom_call.1} parent=1 // pred_check_branch
      %15 = sbr.rel (0) target = $region13
    $region12: #{tpu_custom_call.1} parent=1 // pred_region
      _
    $region13: #{tpu_custom_call.1} parent=1 // pred_fallthru
      _
    // Predicated region
    $region14: #{tpu_custom_call.1} parent=1 // pred_check
      _
    $region15: #{tpu_custom_call.1} parent=1 // pred_check_branch
      %17 = sbr.rel (0) target = $region17
    $region16: #{tpu_custom_call.1} parent=1 // pred_region
      _
    $region17: #{tpu_custom_call.1} parent=1 // pred_fallthru
      _
    %v18 = vld [vmem:[%s0] sm:$0xff]
    %v19 = vld [vmem:[%s0 + $0x8] sm:$0xff]
    %v20 = vld [vmem:[%s1] sm:$0xff]
    %v21 = vld [vmem:[%s1 + $0x8] sm:$0xff]
    %22 = vrot.lane.b32.xlu0 %v18, 16
    %v23 = vpop.permute.xlu0 %22
    %24 = vrot.lane.b32.xlu0 %v19, 16
    %v25 = vpop.permute.xlu0 %24
    %v26 = vlaneseq
    %v27 = vand.u32 %v26, 127
    %vm28 = vcmp.lt.s32.totalorder %v27, 16
    %v29 = vsel %vm28, %v23, %v25
    %v30 = vsel %vm28, %v25, %v23
    %v31 = vsub.f32 %v18, %v30
    %v32 = vsub.f32 %v19, %v29
    %v33 = vand.u32 2147483647, %v31
    %v34 = vand.u32 2147483647, %v32
    %35 = vrot.lane.b32.xlu0 %v20, 16
    %v36 = vpop.permute.xlu0 %35
    %37 = vrot.lane.b32.xlu0 %v21, 16
    %v38 = vpop.permute.xlu0 %37
    %v39 = vsel %vm28, %v36, %v38
    %v40 = vsel %vm28, %v38, %v36
    %v41 = vsub.f32 %v20, %v40
    %v42 = vsub.f32 %v21, %v39
    %v43 = vand.u32 2147483647, %v41
    %v44 = vand.u32 2147483647, %v42
    %45 = vrot.lane.b32.xlu0 %v18, 1
    %v46 = vpop.permute.xlu0 %45
    %47 = vrot.lane.b32.xlu0 %v19, 1
    %v48 = vpop.permute.xlu0 %47
    %vm49 = vcmp.lt.s32.totalorder %v27, 1
    %v50 = vsel %vm49, %v46, %v48
    %v51 = vsel %vm49, %v48, %v46
    %v52 = vsub.f32 %v18, %v51
    %v53 = vsub.f32 %v19, %v50
    %v54 = vand.u32 2147483647, %v52
    %v55 = vand.u32 2147483647, %v53
    %56 = vrot.lane.b32.xlu0 %v20, 1
    %v57 = vpop.permute.xlu0 %56
    %58 = vrot.lane.b32.xlu0 %v21, 1
    %v59 = vpop.permute.xlu0 %58
    %v60 = vsel %vm49, %v57, %v59
    %v61 = vsel %vm49, %v59, %v57
    %v62 = vsub.f32 %v20, %v61
    %v63 = vsub.f32 %v21, %v60
    %v64 = vand.u32 2147483647, %v62
    %v65 = vand.u32 2147483647, %v63
    %v66 = vsub.f32 %v33, %v43
    %v67 = vsub.f32 %v34, %v44
    %v68 = vand.u32 2147483647, %v66
    %v69 = vand.u32 2147483647, %v67
    %v70 = vsub.f32 %v54, %v64
    %v71 = vsub.f32 %v55, %v65
    %v72 = vand.u32 2147483647, %v70
    %v73 = vand.u32 2147483647, %v71
    %v74 = vld [vmem:[%s2] sm:$0xff]
    %v75 = vld [vmem:[%s2 + $0x8] sm:$0xff]
    %v76 = vld [vmem:[%s2 + $0x10] sm:$0xff]
    %v77 = vld [vmem:[%s2 + $0x18] sm:$0xff]
    %v78 = vld [vmem:[%s2 + $0x20] sm:$0xff]
    %v79 = vld [vmem:[%s2 + $0x28] sm:$0xff]
    %v80 = vld [vmem:[%s2 + $0x30] sm:$0xff]
    %v81 = vld [vmem:[%s2 + $0x38] sm:$0xff]
    %v82 = vld [vmem:[%s2 + $0x40] sm:$0xff]
    %v83 = vld [vmem:[%s2 + $0x48] sm:$0xff]
    %v84 = vld [vmem:[%s2 + $0x50] sm:$0xff]
    %v85 = vld [vmem:[%s2 + $0x58] sm:$0xff]
    %v86 = vld [vmem:[%s2 + $0x60] sm:$0xff]
    %v87 = vld [vmem:[%s2 + $0x68] sm:$0xff]
    %v88 = vld [vmem:[%s2 + $0x70] sm:$0xff]
    %v89 = vld [vmem:[%s2 + $0x78] sm:$0xff]
    %v90 = vld [vmem:[%s2 + $0x80] sm:$0xff]
    %v91 = vld [vmem:[%s2 + $0x88] sm:$0xff]
    %v92 = vld [vmem:[%s2 + $0x90] sm:$0xff]
    %v93 = vld [vmem:[%s2 + $0x98] sm:$0xff]
    %v94 = vld [vmem:[%s2 + $0xa0] sm:$0xff]
    %v95 = vld [vmem:[%s2 + $0xa8] sm:$0xff]
    %v96 = vld [vmem:[%s2 + $0xb0] sm:$0xff]
    %v97 = vld [vmem:[%s2 + $0xb8] sm:$0xff]
    %v98 = vld [vmem:[%s2 + $0xc0] sm:$0xff]
    %v99 = vld [vmem:[%s2 + $0xc8] sm:$0xff]
    %v100 = vld [vmem:[%s2 + $0xd0] sm:$0xff]
    %v101 = vld [vmem:[%s2 + $0xd8] sm:$0xff]
    %v102 = vld [vmem:[%s2 + $0xe0] sm:$0xff]
    %v103 = vld [vmem:[%s2 + $0xe8] sm:$0xff]
    %v104 = vld [vmem:[%s2 + $0xf0] sm:$0xff]
    %v105 = vld [vmem:[%s2 + $0xf8] sm:$0xff]
    %v106 = vand.u32 %v89, 4294901760
    %107 = vmatpush.msra.mxu0 %v106
    %v108 = vand.u32 %v88, 4294901760
    %109 = vmatpush.msra.mxu0 %v108
    %v110 = vand.u32 %v87, 4294901760
    %111 = vmatpush.msra.mxu0 %v110
    %v112 = vand.u32 %v86, 4294901760
    %113 = vmatpush.msra.mxu0 %v112
    %v114 = vand.u32 %v85, 4294901760
    %115 = vmatpush.msra.mxu0 %v114
    %v116 = vand.u32 %v84, 4294901760
    %117 = vmatpush.msra.mxu0 %v116
    %v118 = vand.u32 %v83, 4294901760
    %119 = vmatpush.msra.mxu0 %v118
    %v120 = vand.u32 %v82, 4294901760
    %121 = vmatpush.msra.mxu0 %v120
    %v122 = vand.u32 %v81, 4294901760
    %123 = vmatpush.msra.mxu0 %v122
    %v124 = vand.u32 %v80, 4294901760
    %125 = vmatpush.msra.mxu0 %v124
    %v126 = vand.u32 %v79, 4294901760
    %127 = vmatpush.msra.mxu0 %v126
    %v128 = vand.u32 %v78, 4294901760
    %129 = vmatpush.msra.mxu0 %v128
    %v130 = vand.u32 %v77, 4294901760
    %131 = vmatpush.msra.mxu0 %v130
    %v132 = vand.u32 %v76, 4294901760
    %133 = vmatpush.msra.mxu0 %v132
    %v134 = vand.u32 %v75, 4294901760
    %135 = vmatpush.msra.mxu0 %v134
    %v136 = vand.u32 %v74, 4294901760
    %137 = vmatpush.msra.mxu0 %v136
    %v138 = vand.u32 %v68, 4294901760
    %v139 = vsub.f32 %v68, %v138
    %v140 = vand.u32 %v139, 4294901760
    %v141 = vsub.f32 %v139, %v140
    %v142 = vand.u32 %v141, 4294901760
    %143 = vmatmul.f32.gmra.mxu0 %v142
    %v144 = vpop.f32.mrf.mxu0
    %v145 = vadd.f32 0.0, %v144
    %146 = vdwg.mxu0
    %v147 = vand.u32 %v89, 4294901760
    %v148 = vsub.f32 %v89, %v147
    %v149 = vand.u32 %v148, 4294901760
    %v150 = vsub.f32 %v148, %v149
    %v151 = vand.u32 %v150, 4294901760
    %152 = vmatpush.msra.mxu0 %v151
    %v153 = vand.u32 %v88, 4294901760
    %v154 = vsub.f32 %v88, %v153
    %v155 = vand.u32 %v154, 4294901760
    %v156 = vsub.f32 %v154, %v155
    %v157 = vand.u32 %v156, 4294901760
    %158 = vmatpush.msra.mxu0 %v157
    %v159 = vand.u32 %v87, 4294901760
    %v160 = vsub.f32 %v87, %v159
    %v161 = vand.u32 %v160, 4294901760
    %v162 = vsub.f32 %v160, %v161
    %v163 = vand.u32 %v162, 4294901760
    %164 = vmatpush.msra.mxu0 %v163
    %v165 = vand.u32 %v86, 4294901760
    %v166 = vsub.f32 %v86, %v165
    %v167 = vand.u32 %v166, 4294901760
    %v168 = vsub.f32 %v166, %v167
    %v169 = vand.u32 %v168, 4294901760
    %170 = vmatpush.msra.mxu0 %v169
    %v171 = vand.u32 %v85, 4294901760
    %v172 = vsub.f32 %v85, %v171
    %v173 = vand.u32 %v172, 4294901760
    %v174 = vsub.f32 %v172, %v173
    %v175 = vand.u32 %v174, 4294901760
    %176 = vmatpush.msra.mxu0 %v175
    %v177 = vand.u32 %v84, 4294901760
    %v178 = vsub.f32 %v84, %v177
    %v179 = vand.u32 %v178, 4294901760
    %v180 = vsub.f32 %v178, %v179
    %v181 = vand.u32 %v180, 4294901760
    %182 = vmatpush.msra.mxu0 %v181
    %v183 = vand.u32 %v83, 4294901760
    %v184 = vsub.f32 %v83, %v183
    %v185 = vand.u32 %v184, 4294901760
    %v186 = vsub.f32 %v184, %v185
    %v187 = vand.u32 %v186, 4294901760
    %188 = vmatpush.msra.mxu0 %v187
    %v189 = vand.u32 %v82, 4294901760
    %v190 = vsub.f32 %v82, %v189
    %v191 = vand.u32 %v190, 4294901760
    %v192 = vsub.f32 %v190, %v191
    %v193 = vand.u32 %v192, 4294901760
    %194 = vmatpush.msra.mxu0 %v193
    %v195 = vand.u32 %v81, 4294901760
    %v196 = vsub.f32 %v81, %v195
    %v197 = vand.u32 %v196, 4294901760
    %v198 = vsub.f32 %v196, %v197
    %v199 = vand.u32 %v198, 4294901760
    %200 = vmatpush.msra.mxu0 %v199
    %v201 = vand.u32 %v80, 4294901760
    %v202 = vsub.f32 %v80, %v201
    %v203 = vand.u32 %v202, 4294901760
    %v204 = vsub.f32 %v202, %v203
    %v205 = vand.u32 %v204, 4294901760
    %206 = vmatpush.msra.mxu0 %v205
    %v207 = vand.u32 %v79, 4294901760
    %v208 = vsub.f32 %v79, %v207
    %v209 = vand.u32 %v208, 4294901760
    %v210 = vsub.f32 %v208, %v209
    %v211 = vand.u32 %v210, 4294901760
    %212 = vmatpush.msra.mxu0 %v211
    %v213 = vand.u32 %v78, 4294901760
    %v214 = vsub.f32 %v78, %v213
    %v215 = vand.u32 %v214, 4294901760
    %v216 = vsub.f32 %v214, %v215
    %v217 = vand.u32 %v216, 4294901760
    %218 = vmatpush.msra.mxu0 %v217
    %v219 = vand.u32 %v77, 4294901760
    %v220 = vsub.f32 %v77, %v219
    %v221 = vand.u32 %v220, 4294901760
    %v222 = vsub.f32 %v220, %v221
    %v223 = vand.u32 %v222, 4294901760
    %224 = vmatpush.msra.mxu0 %v223
    %v225 = vand.u32 %v76, 4294901760
    %v226 = vsub.f32 %v76, %v225
    %v227 = vand.u32 %v226, 4294901760
    %v228 = vsub.f32 %v226, %v227
    %v229 = vand.u32 %v228, 4294901760
    %230 = vmatpush.msra.mxu0 %v229
    %v231 = vand.u32 %v75, 4294901760
    %v232 = vsub.f32 %v75, %v231
    %v233 = vand.u32 %v232, 4294901760
    %v234 = vsub.f32 %v232, %v233
    %v235 = vand.u32 %v234, 4294901760
    %236 = vmatpush.msra.mxu0 %v235
    %v237 = vand.u32 %v74, 4294901760
    %v238 = vsub.f32 %v74, %v237
    %v239 = vand.u32 %v238, 4294901760
    %v240 = vsub.f32 %v238, %v239
    %v241 = vand.u32 %v240, 4294901760
    %242 = vmatpush.msra.mxu0 %v241
    %v243 = vand.u32 %v68, 4294901760
    %244 = vmatmul.f32.gmra.mxu0 %v243
    %v245 = vpop.f32.mrf.mxu0
    %v246 = vadd.f32 %v145, %v245
    %247 = vdwg.mxu0
    %v248 = vand.u32 %v89, 4294901760
    %v249 = vsub.f32 %v89, %v248
    %250 = vmatpush.msra.mxu0 %v249
    %v251 = vand.u32 %v88, 4294901760
    %v252 = vsub.f32 %v88, %v251
    %253 = vmatpush.msra.mxu0 %v252
    %v254 = vand.u32 %v87, 4294901760
    %v255 = vsub.f32 %v87, %v254
    %256 = vmatpush.msra.mxu0 %v255
    %v257 = vand.u32 %v86, 4294901760
    %v258 = vsub.f32 %v86, %v257
    %259 = vmatpush.msra.mxu0 %v258
    %v260 = vand.u32 %v85, 4294901760
    %v261 = vsub.f32 %v85, %v260
    %262 = vmatpush.msra.mxu0 %v261
    %v263 = vand.u32 %v84, 4294901760
    %v264 = vsub.f32 %v84, %v263
    %265 = vmatpush.msra.mxu0 %v264
    %v266 = vand.u32 %v83, 4294901760
    %v267 = vsub.f32 %v83, %v266
    %268 = vmatpush.msra.mxu0 %v267
    %v269 = vand.u32 %v82, 4294901760
    %v270 = vsub.f32 %v82, %v269
    %271 = vmatpush.msra.mxu0 %v270
    %v272 = vand.u32 %v81, 4294901760
    %v273 = vsub.f32 %v81, %v272
    %274 = vmatpush.msra.mxu0 %v273
    %v275 = vand.u32 %v80, 4294901760
    %v276 = vsub.f32 %v80, %v275
    %277 = vmatpush.msra.mxu0 %v276
    %v278 = vand.u32 %v79, 4294901760
    %v279 = vsub.f32 %v79, %v278
    %280 = vmatpush.msra.mxu0 %v279
    %v281 = vand.u32 %v78, 4294901760
    %v282 = vsub.f32 %v78, %v281
    %283 = vmatpush.msra.mxu0 %v282
    %v284 = vand.u32 %v77, 4294901760
    %v285 = vsub.f32 %v77, %v284
    %286 = vmatpush.msra.mxu0 %v285
    %v287 = vand.u32 %v76, 4294901760
    %v288 = vsub.f32 %v76, %v287
    %289 = vmatpush.msra.mxu0 %v288
    %v290 = vand.u32 %v75, 4294901760
    %v291 = vsub.f32 %v75, %v290
    %292 = vmatpush.msra.mxu0 %v291
    %v293 = vand.u32 %v74, 4294901760
    %v294 = vsub.f32 %v74, %v293
    %295 = vmatpush.msra.mxu0 %v294
    %v296 = vand.u32 %v68, 4294901760
    %v297 = vsub.f32 %v68, %v296
    %298 = vmatmul.f32.gmra.mxu0 %v297
    %v299 = vpop.f32.mrf.mxu0
    %v300 = vadd.f32 %v246, %v299
    %301 = vdwg.mxu0
    %v302 = vand.u32 %v89, 4294901760
    %303 = vmatpush.msra.mxu0 %v302
    %v304 = vand.u32 %v88, 4294901760
    %305 = vmatpush.msra.mxu0 %v304
    %v306 = vand.u32 %v87, 4294901760
    %307 = vmatpush.msra.mxu0 %v306
    %v308 = vand.u32 %v86, 4294901760
    %309 = vmatpush.msra.mxu0 %v308
    %v310 = vand.u32 %v85, 4294901760
    %311 = vmatpush.msra.mxu0 %v310
    %v312 = vand.u32 %v84, 4294901760
    %313 = vmatpush.msra.mxu0 %v312
    %v314 = vand.u32 %v83, 4294901760
    %315 = vmatpush.msra.mxu0 %v314
    %v316 = vand.u32 %v82, 4294901760
    %317 = vmatpush.msra.mxu0 %v316
    %v318 = vand.u32 %v81, 4294901760
    %319 = vmatpush.msra.mxu0 %v318
    %v320 = vand.u32 %v80, 4294901760
    %321 = vmatpush.msra.mxu0 %v320
    %v322 = vand.u32 %v79, 4294901760
    %323 = vmatpush.msra.mxu0 %v322
    %v324 = vand.u32 %v78, 4294901760
    %325 = vmatpush.msra.mxu0 %v324
    %v326 = vand.u32 %v77, 4294901760
    %327 = vmatpush.msra.mxu0 %v326
    %v328 = vand.u32 %v76, 4294901760
    %329 = vmatpush.msra.mxu0 %v328
    %v330 = vand.u32 %v75, 4294901760
    %331 = vmatpush.msra.mxu0 %v330
    %v332 = vand.u32 %v74, 4294901760
    %333 = vmatpush.msra.mxu0 %v332
    %v334 = vand.u32 %v68, 4294901760
    %v335 = vsub.f32 %v68, %v334
    %v336 = vand.u32 %v335, 4294901760
    %337 = vmatmul.f32.gmra.mxu0 %v336
    %v338 = vpop.f32.mrf.mxu0
    %v339 = vadd.f32 %v300, %v338
    %340 = vdwg.mxu0
    %v341 = vand.u32 %v89, 4294901760
    %v342 = vsub.f32 %v89, %v341
    %v343 = vand.u32 %v342, 4294901760
    %344 = vmatpush.msra.mxu0 %v343
    %v345 = vand.u32 %v88, 4294901760
    %v346 = vsub.f32 %v88, %v345
    %v347 = vand.u32 %v346, 4294901760
    %348 = vmatpush.msra.mxu0 %v347
    %v349 = vand.u32 %v87, 4294901760
    %v350 = vsub.f32 %v87, %v349
    %v351 = vand.u32 %v350, 4294901760
    %352 = vmatpush.msra.mxu0 %v351
    %v353 = vand.u32 %v86, 4294901760
    %v354 = vsub.f32 %v86, %v353
    %v355 = vand.u32 %v354, 4294901760
    %356 = vmatpush.msra.mxu0 %v355
    %v357 = vand.u32 %v85, 4294901760
    %v358 = vsub.f32 %v85, %v357
    %v359 = vand.u32 %v358, 4294901760
    %360 = vmatpush.msra.mxu0 %v359
    %v361 = vand.u32 %v84, 4294901760
    %v362 = vsub.f32 %v84, %v361
    %v363 = vand.u32 %v362, 4294901760
    %364 = vmatpush.msra.mxu0 %v363
    %v365 = vand.u32 %v83, 4294901760
    %v366 = vsub.f32 %v83, %v365
    %v367 = vand.u32 %v366, 4294901760
    %368 = vmatpush.msra.mxu0 %v367
    %v369 = vand.u32 %v82, 4294901760
    %v370 = vsub.f32 %v82, %v369
    %v371 = vand.u32 %v370, 4294901760
    %372 = vmatpush.msra.mxu0 %v371
    %v373 = vand.u32 %v81, 4294901760
    %v374 = vsub.f32 %v81, %v373
    %v375 = vand.u32 %v374, 4294901760
    %376 = vmatpush.msra.mxu0 %v375
    %v377 = vand.u32 %v80, 4294901760
    %v378 = vsub.f32 %v80, %v377
    %v379 = vand.u32 %v378, 4294901760
    %380 = vmatpush.msra.mxu0 %v379
    %v381 = vand.u32 %v79, 4294901760
    %v382 = vsub.f32 %v79, %v381
    %v383 = vand.u32 %v382, 4294901760
    %384 = vmatpush.msra.mxu0 %v383
    %v385 = vand.u32 %v78, 4294901760
    %v386 = vsub.f32 %v78, %v385
    %v387 = vand.u32 %v386, 4294901760
    %388 = vmatpush.msra.mxu0 %v387
    %v389 = vand.u32 %v77, 4294901760
    %v390 = vsub.f32 %v77, %v389
    %v391 = vand.u32 %v390, 4294901760
    %392 = vmatpush.msra.mxu0 %v391
    %v393 = vand.u32 %v76, 4294901760
    %v394 = vsub.f32 %v76, %v393
    %v395 = vand.u32 %v394, 4294901760
    %396 = vmatpush.msra.mxu0 %v395
    %v397 = vand.u32 %v75, 4294901760
    %v398 = vsub.f32 %v75, %v397
    %v399 = vand.u32 %v398, 4294901760
    %400 = vmatpush.msra.mxu0 %v399
    %v401 = vand.u32 %v74, 4294901760
    %v402 = vsub.f32 %v74, %v401
    %v403 = vand.u32 %v402, 4294901760
    %404 = vmatpush.msra.mxu0 %v403
    %v405 = vand.u32 %v68, 4294901760
    %406 = vmatmul.f32.gmra.mxu0 %v405
    %v407 = vpop.f32.mrf.mxu0
    %v408 = vadd.f32 %v339, %v407
    %409 = vdwg.mxu0
    %v410 = vand.u32 %v89, 4294901760
    %411 = vmatpush.msra.mxu0 %v410
    %v412 = vand.u32 %v88, 4294901760
    %413 = vmatpush.msra.mxu0 %v412
    %v414 = vand.u32 %v87, 4294901760
    %415 = vmatpush.msra.mxu0 %v414
    %v416 = vand.u32 %v86, 4294901760
    %417 = vmatpush.msra.mxu0 %v416
    %v418 = vand.u32 %v85, 4294901760
    %419 = vmatpush.msra.mxu0 %v418
    %v420 = vand.u32 %v84, 4294901760
    %421 = vmatpush.msra.mxu0 %v420
    %v422 = vand.u32 %v83, 4294901760
    %423 = vmatpush.msra.mxu0 %v422
    %v424 = vand.u32 %v82, 4294901760
    %425 = vmatpush.msra.mxu0 %v424
    %v426 = vand.u32 %v81, 4294901760
    %427 = vmatpush.msra.mxu0 %v426
    %v428 = vand.u32 %v80, 4294901760
    %429 = vmatpush.msra.mxu0 %v428
    %v430 = vand.u32 %v79, 4294901760
    %431 = vmatpush.msra.mxu0 %v430
    %v432 = vand.u32 %v78, 4294901760
    %433 = vmatpush.msra.mxu0 %v432
    %v434 = vand.u32 %v77, 4294901760
    %435 = vmatpush.msra.mxu0 %v434
    %v436 = vand.u32 %v76, 4294901760
    %437 = vmatpush.msra.mxu0 %v436
    %v438 = vand.u32 %v75, 4294901760
    %439 = vmatpush.msra.mxu0 %v438
    %v440 = vand.u32 %v74, 4294901760
    %441 = vmatpush.msra.mxu0 %v440
    %v442 = vand.u32 %v68, 4294901760
    %443 = vmatmul.f32.gmra.mxu0 %v442
    %v444 = vpop.f32.mrf.mxu0
    %v445 = vadd.f32 %v408, %v444
    %446 = vdwg.mxu0
    %v447 = vand.u32 %v105, 4294901760
    %448 = vmatpush.msra.mxu0 %v447
    %v449 = vand.u32 %v104, 4294901760
    %450 = vmatpush.msra.mxu0 %v449
    %v451 = vand.u32 %v103, 4294901760
    %452 = vmatpush.msra.mxu0 %v451
    %v453 = vand.u32 %v102, 4294901760
    %454 = vmatpush.msra.mxu0 %v453
    %v455 = vand.u32 %v101, 4294901760
    %456 = vmatpush.msra.mxu0 %v455
    %v457 = vand.u32 %v100, 4294901760
    %458 = vmatpush.msra.mxu0 %v457
    %v459 = vand.u32 %v99, 4294901760
    %460 = vmatpush.msra.mxu0 %v459
    %v461 = vand.u32 %v98, 4294901760
    %462 = vmatpush.msra.mxu0 %v461
    %v463 = vand.u32 %v97, 4294901760
    %464 = vmatpush.msra.mxu0 %v463
    %v465 = vand.u32 %v96, 4294901760
    %466 = vmatpush.msra.mxu0 %v465
    %v467 = vand.u32 %v95, 4294901760
    %468 = vmatpush.msra.mxu0 %v467
    %v469 = vand.u32 %v94, 4294901760
    %470 = vmatpush.msra.mxu0 %v469
    %v471 = vand.u32 %v93, 4294901760
    %472 = vmatpush.msra.mxu0 %v471
    %v473 = vand.u32 %v92, 4294901760
    %474 = vmatpush.msra.mxu0 %v473
    %v475 = vand.u32 %v91, 4294901760
    %476 = vmatpush.msra.mxu0 %v475
    %v477 = vand.u32 %v90, 4294901760
    %478 = vmatpush.msra.mxu0 %v477
    %v479 = vand.u32 %v69, 4294901760
    %v480 = vsub.f32 %v69, %v479
    %v481 = vand.u32 %v480, 4294901760
    %v482 = vsub.f32 %v480, %v481
    %v483 = vand.u32 %v482, 4294901760
    %484 = vmatmul.f32.gmra.mxu0 %v483
    %v485 = vpop.f32.mrf.mxu0
    %v486 = vadd.f32 %v445, %v485
    %487 = vdwg.mxu0
    %v488 = vand.u32 %v105, 4294901760
    %v489 = vsub.f32 %v105, %v488
    %v490 = vand.u32 %v489, 4294901760
    %v491 = vsub.f32 %v489, %v490
    %v492 = vand.u32 %v491, 4294901760
    %493 = vmatpush.msra.mxu0 %v492
    %v494 = vand.u32 %v104, 4294901760
    %v495 = vsub.f32 %v104, %v494
    %v496 = vand.u32 %v495, 4294901760
    %v497 = vsub.f32 %v495, %v496
    %v498 = vand.u32 %v497, 4294901760
    %499 = vmatpush.msra.mxu0 %v498
    %v500 = vand.u32 %v103, 4294901760
    %v501 = vsub.f32 %v103, %v500
    %v502 = vand.u32 %v501, 4294901760
    %v503 = vsub.f32 %v501, %v502
    %v504 = vand.u32 %v503, 4294901760
    %505 = vmatpush.msra.mxu0 %v504
    %v506 = vand.u32 %v102, 4294901760
    %v507 = vsub.f32 %v102, %v506
    %v508 = vand.u32 %v507, 4294901760
    %v509 = vsub.f32 %v507, %v508
    %v510 = vand.u32 %v509, 4294901760
    %511 = vmatpush.msra.mxu0 %v510
    %v512 = vand.u32 %v101, 4294901760
    %v513 = vsub.f32 %v101, %v512
    %v514 = vand.u32 %v513, 4294901760
    %v515 = vsub.f32 %v513, %v514
    %v516 = vand.u32 %v515, 4294901760
    %517 = vmatpush.msra.mxu0 %v516
    %v518 = vand.u32 %v100, 4294901760
    %v519 = vsub.f32 %v100, %v518
    %v520 = vand.u32 %v519, 4294901760
    %v521 = vsub.f32 %v519, %v520
    %v522 = vand.u32 %v521, 4294901760
    %523 = vmatpush.msra.mxu0 %v522
    %v524 = vand.u32 %v99, 4294901760
    %v525 = vsub.f32 %v99, %v524
    %v526 = vand.u32 %v525, 4294901760
    %v527 = vsub.f32 %v525, %v526
    %v528 = vand.u32 %v527, 4294901760
    %529 = vmatpush.msra.mxu0 %v528
    %v530 = vand.u32 %v98, 4294901760
    %v531 = vsub.f32 %v98, %v530
    %v532 = vand.u32 %v531, 4294901760
    %v533 = vsub.f32 %v531, %v532
    %v534 = vand.u32 %v533, 4294901760
    %535 = vmatpush.msra.mxu0 %v534
    %v536 = vand.u32 %v97, 4294901760
    %v537 = vsub.f32 %v97, %v536
    %v538 = vand.u32 %v537, 4294901760
    %v539 = vsub.f32 %v537, %v538
    %v540 = vand.u32 %v539, 4294901760
    %541 = vmatpush.msra.mxu0 %v540
    %v542 = vand.u32 %v96, 4294901760
    %v543 = vsub.f32 %v96, %v542
    %v544 = vand.u32 %v543, 4294901760
    %v545 = vsub.f32 %v543, %v544
    %v546 = vand.u32 %v545, 4294901760
    %547 = vmatpush.msra.mxu0 %v546
    %v548 = vand.u32 %v95, 4294901760
    %v549 = vsub.f32 %v95, %v548
    %v550 = vand.u32 %v549, 4294901760
    %v551 = vsub.f32 %v549, %v550
    %v552 = vand.u32 %v551, 4294901760
    %553 = vmatpush.msra.mxu0 %v552
    %v554 = vand.u32 %v94, 4294901760
    %v555 = vsub.f32 %v94, %v554
    %v556 = vand.u32 %v555, 4294901760
    %v557 = vsub.f32 %v555, %v556
    %v558 = vand.u32 %v557, 4294901760
    %559 = vmatpush.msra.mxu0 %v558
    %v560 = vand.u32 %v93, 4294901760
    %v561 = vsub.f32 %v93, %v560
    %v562 = vand.u32 %v561, 4294901760
    %v563 = vsub.f32 %v561, %v562
    %v564 = vand.u32 %v563, 4294901760
    %565 = vmatpush.msra.mxu0 %v564
    %v566 = vand.u32 %v92, 4294901760
    %v567 = vsub.f32 %v92, %v566
    %v568 = vand.u32 %v567, 4294901760
    %v569 = vsub.f32 %v567, %v568
    %v570 = vand.u32 %v569, 4294901760
    %571 = vmatpush.msra.mxu0 %v570
    %v572 = vand.u32 %v91, 4294901760
    %v573 = vsub.f32 %v91, %v572
    %v574 = vand.u32 %v573, 4294901760
    %v575 = vsub.f32 %v573, %v574
    %v576 = vand.u32 %v575, 4294901760
    %577 = vmatpush.msra.mxu0 %v576
    %v578 = vand.u32 %v90, 4294901760
    %v579 = vsub.f32 %v90, %v578
    %v580 = vand.u32 %v579, 4294901760
    %v581 = vsub.f32 %v579, %v580
    %v582 = vand.u32 %v581, 4294901760
    %583 = vmatpush.msra.mxu0 %v582
    %v584 = vand.u32 %v69, 4294901760
    %585 = vmatmul.f32.gmra.mxu0 %v584
    %v586 = vpop.f32.mrf.mxu0
    %v587 = vadd.f32 %v486, %v586
    %588 = vdwg.mxu0
    %v589 = vand.u32 %v105, 4294901760
    %v590 = vsub.f32 %v105, %v589
    %591 = vmatpush.msra.mxu0 %v590
    %v592 = vand.u32 %v104, 4294901760
    %v593 = vsub.f32 %v104, %v592
    %594 = vmatpush.msra.mxu0 %v593
    %v595 = vand.u32 %v103, 4294901760
    %v596 = vsub.f32 %v103, %v595
    %597 = vmatpush.msra.mxu0 %v596
    %v598 = vand.u32 %v102, 4294901760
    %v599 = vsub.f32 %v102, %v598
    %600 = vmatpush.msra.mxu0 %v599
    %v601 = vand.u32 %v101, 4294901760
    %v602 = vsub.f32 %v101, %v601
    %603 = vmatpush.msra.mxu0 %v602
    %v604 = vand.u32 %v100, 4294901760
    %v605 = vsub.f32 %v100, %v604
    %606 = vmatpush.msra.mxu0 %v605
    %v607 = vand.u32 %v99, 4294901760
    %v608 = vsub.f32 %v99, %v607
    %609 = vmatpush.msra.mxu0 %v608
    %v610 = vand.u32 %v98, 4294901760
    %v611 = vsub.f32 %v98, %v610
    %612 = vmatpush.msra.mxu0 %v611
    %v613 = vand.u32 %v97, 4294901760
    %v614 = vsub.f32 %v97, %v613
    %615 = vmatpush.msra.mxu0 %v614
    %v616 = vand.u32 %v96, 4294901760
    %v617 = vsub.f32 %v96, %v616
    %618 = vmatpush.msra.mxu0 %v617
    %v619 = vand.u32 %v95, 4294901760
    %v620 = vsub.f32 %v95, %v619
    %621 = vmatpush.msra.mxu0 %v620
    %v622 = vand.u32 %v94, 4294901760
    %v623 = vsub.f32 %v94, %v622
    %624 = vmatpush.msra.mxu0 %v623
    %v625 = vand.u32 %v93, 4294901760
    %v626 = vsub.f32 %v93, %v625
    %627 = vmatpush.msra.mxu0 %v626
    %v628 = vand.u32 %v92, 4294901760
    %v629 = vsub.f32 %v92, %v628
    %630 = vmatpush.msra.mxu0 %v629
    %v631 = vand.u32 %v91, 4294901760
    %v632 = vsub.f32 %v91, %v631
    %633 = vmatpush.msra.mxu0 %v632
    %v634 = vand.u32 %v90, 4294901760
    %v635 = vsub.f32 %v90, %v634
    %636 = vmatpush.msra.mxu0 %v635
    %v637 = vand.u32 %v69, 4294901760
    %v638 = vsub.f32 %v69, %v637
    %639 = vmatmul.f32.gmra.mxu0 %v638
    %v640 = vpop.f32.mrf.mxu0
    %v641 = vadd.f32 %v587, %v640
    %642 = vdwg.mxu0
    %v643 = vand.u32 %v105, 4294901760
    %644 = vmatpush.msra.mxu0 %v643
    %v645 = vand.u32 %v104, 4294901760
    %646 = vmatpush.msra.mxu0 %v645
    %v647 = vand.u32 %v103, 4294901760
    %648 = vmatpush.msra.mxu0 %v647
    %v649 = vand.u32 %v102, 4294901760
    %650 = vmatpush.msra.mxu0 %v649
    %v651 = vand.u32 %v101, 4294901760
    %652 = vmatpush.msra.mxu0 %v651
    %v653 = vand.u32 %v100, 4294901760
    %654 = vmatpush.msra.mxu0 %v653
    %v655 = vand.u32 %v99, 4294901760
    %656 = vmatpush.msra.mxu0 %v655
    %v657 = vand.u32 %v98, 4294901760
    %658 = vmatpush.msra.mxu0 %v657
    %v659 = vand.u32 %v97, 4294901760
    %660 = vmatpush.msra.mxu0 %v659
    %v661 = vand.u32 %v96, 4294901760
    %662 = vmatpush.msra.mxu0 %v661
    %v663 = vand.u32 %v95, 4294901760
    %664 = vmatpush.msra.mxu0 %v663
    %v665 = vand.u32 %v94, 4294901760
    %666 = vmatpush.msra.mxu0 %v665
    %v667 = vand.u32 %v93, 4294901760
    %668 = vmatpush.msra.mxu0 %v667
    %v669 = vand.u32 %v92, 4294901760
    %670 = vmatpush.msra.mxu0 %v669
    %v671 = vand.u32 %v91, 4294901760
    %672 = vmatpush.msra.mxu0 %v671
    %v673 = vand.u32 %v90, 4294901760
    %674 = vmatpush.msra.mxu0 %v673
    %v675 = vand.u32 %v69, 4294901760
    %v676 = vsub.f32 %v69, %v675
    %v677 = vand.u32 %v676, 4294901760
    %678 = vmatmul.f32.gmra.mxu0 %v677
    %v679 = vpop.f32.mrf.mxu0
    %v680 = vadd.f32 %v641, %v679
    %681 = vdwg.mxu0
    %v682 = vand.u32 %v105, 4294901760
    %v683 = vsub.f32 %v105, %v682
    %v684 = vand.u32 %v683, 4294901760
    %685 = vmatpush.msra.mxu0 %v684
    %v686 = vand.u32 %v104, 4294901760
    %v687 = vsub.f32 %v104, %v686
    %v688 = vand.u32 %v687, 4294901760
    %689 = vmatpush.msra.mxu0 %v688
    %v690 = vand.u32 %v103, 4294901760
    %v691 = vsub.f32 %v103, %v690
    %v692 = vand.u32 %v691, 4294901760
    %693 = vmatpush.msra.mxu0 %v692
    %v694 = vand.u32 %v102, 4294901760
    %v695 = vsub.f32 %v102, %v694
    %v696 = vand.u32 %v695, 4294901760
    %697 = vmatpush.msra.mxu0 %v696
    %v698 = vand.u32 %v101, 4294901760
    %v699 = vsub.f32 %v101, %v698
    %v700 = vand.u32 %v699, 4294901760
    %701 = vmatpush.msra.mxu0 %v700
    %v702 = vand.u32 %v100, 4294901760
    %v703 = vsub.f32 %v100, %v702
    %v704 = vand.u32 %v703, 4294901760
    %705 = vmatpush.msra.mxu0 %v704
    %v706 = vand.u32 %v99, 4294901760
    %v707 = vsub.f32 %v99, %v706
    %v708 = vand.u32 %v707, 4294901760
    %709 = vmatpush.msra.mxu0 %v708
    %v710 = vand.u32 %v98, 4294901760
    %v711 = vsub.f32 %v98, %v710
    %v712 = vand.u32 %v711, 4294901760
    %713 = vmatpush.msra.mxu0 %v712
    %v714 = vand.u32 %v97, 4294901760
    %v715 = vsub.f32 %v97, %v714
    %v716 = vand.u32 %v715, 4294901760
    %717 = vmatpush.msra.mxu0 %v716
    %v718 = vand.u32 %v96, 4294901760
    %v719 = vsub.f32 %v96, %v718
    %v720 = vand.u32 %v719, 4294901760
    %721 = vmatpush.msra.mxu0 %v720
    %v722 = vand.u32 %v95, 4294901760
    %v723 = vsub.f32 %v95, %v722
    %v724 = vand.u32 %v723, 4294901760
    %725 = vmatpush.msra.mxu0 %v724
    %v726 = vand.u32 %v94, 4294901760
    %v727 = vsub.f32 %v94, %v726
    %v728 = vand.u32 %v727, 4294901760
    %729 = vmatpush.msra.mxu0 %v728
    %v730 = vand.u32 %v93, 4294901760
    %v731 = vsub.f32 %v93, %v730
    %v732 = vand.u32 %v731, 4294901760
    %733 = vmatpush.msra.mxu0 %v732
    %v734 = vand.u32 %v92, 4294901760
    %v735 = vsub.f32 %v92, %v734
    %v736 = vand.u32 %v735, 4294901760
    %737 = vmatpush.msra.mxu0 %v736
    %v738 = vand.u32 %v91, 4294901760
    %v739 = vsub.f32 %v91, %v738
    %v740 = vand.u32 %v739, 4294901760
    %741 = vmatpush.msra.mxu0 %v740
    %v742 = vand.u32 %v90, 4294901760
    %v743 = vsub.f32 %v90, %v742
    %v744 = vand.u32 %v743, 4294901760
    %745 = vmatpush.msra.mxu0 %v744
    %v746 = vand.u32 %v69, 4294901760
    %747 = vmatmul.f32.gmra.mxu0 %v746
    %v748 = vpop.f32.mrf.mxu0
    %v749 = vadd.f32 %v680, %v748
    %750 = vdwg.mxu0
    %v751 = vand.u32 %v105, 4294901760
    %752 = vmatpush.msra.mxu0 %v751
    %v753 = vand.u32 %v104, 4294901760
    %754 = vmatpush.msra.mxu0 %v753
    %v755 = vand.u32 %v103, 4294901760
    %756 = vmatpush.msra.mxu0 %v755
    %v757 = vand.u32 %v102, 4294901760
    %758 = vmatpush.msra.mxu0 %v757
    %v759 = vand.u32 %v101, 4294901760
    %760 = vmatpush.msra.mxu0 %v759
    %v761 = vand.u32 %v100, 4294901760
    %762 = vmatpush.msra.mxu0 %v761
    %v763 = vand.u32 %v99, 4294901760
    %764 = vmatpush.msra.mxu0 %v763
    %v765 = vand.u32 %v98, 4294901760
    %766 = vmatpush.msra.mxu0 %v765
    %v767 = vand.u32 %v97, 4294901760
    %768 = vmatpush.msra.mxu0 %v767
    %v769 = vand.u32 %v96, 4294901760
    %770 = vmatpush.msra.mxu0 %v769
    %v771 = vand.u32 %v95, 4294901760
    %772 = vmatpush.msra.mxu0 %v771
    %v773 = vand.u32 %v94, 4294901760
    %774 = vmatpush.msra.mxu0 %v773
    %v775 = vand.u32 %v93, 4294901760
    %776 = vmatpush.msra.mxu0 %v775
    %v777 = vand.u32 %v92, 4294901760
    %778 = vmatpush.msra.mxu0 %v777
    %v779 = vand.u32 %v91, 4294901760
    %780 = vmatpush.msra.mxu0 %v779
    %v781 = vand.u32 %v90, 4294901760
    %782 = vmatpush.msra.mxu0 %v781
    %v783 = vand.u32 %v69, 4294901760
    %784 = vmatmul.f32.gmra.mxu0 %v783
    %v785 = vpop.f32.mrf.mxu0
    %v786 = vadd.f32 %v749, %v785
    %787 = vdwg.mxu0
    %vm788 = vcmask 7168
    %v789 = vsel %vm788, %v786, 0.0
    %790 = vadd.xlane.f32.xlu0 %v789
    %v791 = vpop.xlane.xlu0 %790
    %v792 = vrot.slane %v791, 4
    %v793 = vadd.f32 %v791, %v792
    %v794 = vrot.slane %v793, 2
    %v795 = vadd.f32 %v793, %v794
    %v796 = vrot.slane %v795, 1
    %v797 = vadd.f32 %v795, %v796
    %s798 = vtos %v797
    %v799 = vld [vmem:[%s3] sm:$0xff]
    %v800 = vld [vmem:[%s3 + $0x8] sm:$0xff]
    %v801 = vld [vmem:[%s3 + $0x10] sm:$0xff]
    %v802 = vld [vmem:[%s3 + $0x18] sm:$0xff]
    %v803 = vld [vmem:[%s3 + $0x20] sm:$0xff]
    %v804 = vld [vmem:[%s3 + $0x28] sm:$0xff]
    %v805 = vld [vmem:[%s3 + $0x30] sm:$0xff]
    %v806 = vld [vmem:[%s3 + $0x38] sm:$0xff]
    %v807 = vld [vmem:[%s3 + $0x40] sm:$0xff]
    %v808 = vld [vmem:[%s3 + $0x48] sm:$0xff]
    %v809 = vld [vmem:[%s3 + $0x50] sm:$0xff]
    %v810 = vld [vmem:[%s3 + $0x58] sm:$0xff]
    %v811 = vld [vmem:[%s3 + $0x60] sm:$0xff]
    %v812 = vld [vmem:[%s3 + $0x68] sm:$0xff]
    %v813 = vld [vmem:[%s3 + $0x70] sm:$0xff]
    %v814 = vld [vmem:[%s3 + $0x78] sm:$0xff]
    %v815 = vld [vmem:[%s3 + $0x80] sm:$0xff]
    %v816 = vld [vmem:[%s3 + $0x88] sm:$0xff]
    %v817 = vld [vmem:[%s3 + $0x90] sm:$0xff]
    %v818 = vld [vmem:[%s3 + $0x98] sm:$0xff]
    %v819 = vld [vmem:[%s3 + $0xa0] sm:$0xff]
    %v820 = vld [vmem:[%s3 + $0xa8] sm:$0xff]
    %v821 = vld [vmem:[%s3 + $0xb0] sm:$0xff]
    %v822 = vld [vmem:[%s3 + $0xb8] sm:$0xff]
    %v823 = vld [vmem:[%s3 + $0xc0] sm:$0xff]
    %v824 = vld [vmem:[%s3 + $0xc8] sm:$0xff]
    %v825 = vld [vmem:[%s3 + $0xd0] sm:$0xff]
    %v826 = vld [vmem:[%s3 + $0xd8] sm:$0xff]
    %v827 = vld [vmem:[%s3 + $0xe0] sm:$0xff]
    %v828 = vld [vmem:[%s3 + $0xe8] sm:$0xff]
    %v829 = vld [vmem:[%s3 + $0xf0] sm:$0xff]
    %v830 = vld [vmem:[%s3 + $0xf8] sm:$0xff]
    %v831 = vand.u32 %v814, 4294901760
    %832 = vmatpush.msra.mxu0 %v831
    %v833 = vand.u32 %v813, 4294901760
    %834 = vmatpush.msra.mxu0 %v833
    %v835 = vand.u32 %v812, 4294901760
    %836 = vmatpush.msra.mxu0 %v835
    %v837 = vand.u32 %v811, 4294901760
    %838 = vmatpush.msra.mxu0 %v837
    %v839 = vand.u32 %v810, 4294901760
    %840 = vmatpush.msra.mxu0 %v839
    %v841 = vand.u32 %v809, 4294901760
    %842 = vmatpush.msra.mxu0 %v841
    %v843 = vand.u32 %v808, 4294901760
    %844 = vmatpush.msra.mxu0 %v843
    %v845 = vand.u32 %v807, 4294901760
    %846 = vmatpush.msra.mxu0 %v845
    %v847 = vand.u32 %v806, 4294901760
    %848 = vmatpush.msra.mxu0 %v847
    %v849 = vand.u32 %v805, 4294901760
    %850 = vmatpush.msra.mxu0 %v849
    %v851 = vand.u32 %v804, 4294901760
    %852 = vmatpush.msra.mxu0 %v851
    %v853 = vand.u32 %v803, 4294901760
    %854 = vmatpush.msra.mxu0 %v853
    %v855 = vand.u32 %v802, 4294901760
    %856 = vmatpush.msra.mxu0 %v855
    %v857 = vand.u32 %v801, 4294901760
    %858 = vmatpush.msra.mxu0 %v857
    %v859 = vand.u32 %v800, 4294901760
    %860 = vmatpush.msra.mxu0 %v859
    %v861 = vand.u32 %v799, 4294901760
    %862 = vmatpush.msra.mxu0 %v861
    %v863 = vand.u32 %v72, 4294901760
    %v864 = vsub.f32 %v72, %v863
    %v865 = vand.u32 %v864, 4294901760
    %v866 = vsub.f32 %v864, %v865
    %v867 = vand.u32 %v866, 4294901760
    %868 = vmatmul.f32.gmra.mxu0 %v867
    %v869 = vpop.f32.mrf.mxu0
    %v870 = vadd.f32 0.0, %v869
    %871 = vdwg.mxu0
    %v872 = vand.u32 %v814, 4294901760
    %v873 = vsub.f32 %v814, %v872
    %v874 = vand.u32 %v873, 4294901760
    %v875 = vsub.f32 %v873, %v874
    %v876 = vand.u32 %v875, 4294901760
    %877 = vmatpush.msra.mxu0 %v876
    %v878 = vand.u32 %v813, 4294901760
    %v879 = vsub.f32 %v813, %v878
    %v880 = vand.u32 %v879, 4294901760
    %v881 = vsub.f32 %v879, %v880
    %v882 = vand.u32 %v881, 4294901760
    %883 = vmatpush.msra.mxu0 %v882
    %v884 = vand.u32 %v812, 4294901760
    %v885 = vsub.f32 %v812, %v884
    %v886 = vand.u32 %v885, 4294901760
    %v887 = vsub.f32 %v885, %v886
    %v888 = vand.u32 %v887, 4294901760
    %889 = vmatpush.msra.mxu0 %v888
    %v890 = vand.u32 %v811, 4294901760
    %v891 = vsub.f32 %v811, %v890
    %v892 = vand.u32 %v891, 4294901760
    %v893 = vsub.f32 %v891, %v892
    %v894 = vand.u32 %v893, 4294901760
    %895 = vmatpush.msra.mxu0 %v894
    %v896 = vand.u32 %v810, 4294901760
    %v897 = vsub.f32 %v810, %v896
    %v898 = vand.u32 %v897, 4294901760
    %v899 = vsub.f32 %v897, %v898
    %v900 = vand.u32 %v899, 4294901760
    %901 = vmatpush.msra.mxu0 %v900
    %v902 = vand.u32 %v809, 4294901760
    %v903 = vsub.f32 %v809, %v902
    %v904 = vand.u32 %v903, 4294901760
    %v905 = vsub.f32 %v903, %v904
    %v906 = vand.u32 %v905, 4294901760
    %907 = vmatpush.msra.mxu0 %v906
    %v908 = vand.u32 %v808, 4294901760
    %v909 = vsub.f32 %v808, %v908
    %v910 = vand.u32 %v909, 4294901760
    %v911 = vsub.f32 %v909, %v910
    %v912 = vand.u32 %v911, 4294901760
    %913 = vmatpush.msra.mxu0 %v912
    %v914 = vand.u32 %v807, 4294901760
    %v915 = vsub.f32 %v807, %v914
    %v916 = vand.u32 %v915, 4294901760
    %v917 = vsub.f32 %v915, %v916
    %v918 = vand.u32 %v917, 4294901760
    %919 = vmatpush.msra.mxu0 %v918
    %v920 = vand.u32 %v806, 4294901760
    %v921 = vsub.f32 %v806, %v920
    %v922 = vand.u32 %v921, 4294901760
    %v923 = vsub.f32 %v921, %v922
    %v924 = vand.u32 %v923, 4294901760
    %925 = vmatpush.msra.mxu0 %v924
    %v926 = vand.u32 %v805, 4294901760
    %v927 = vsub.f32 %v805, %v926
    %v928 = vand.u32 %v927, 4294901760
    %v929 = vsub.f32 %v927, %v928
    %v930 = vand.u32 %v929, 4294901760
    %931 = vmatpush.msra.mxu0 %v930
    %v932 = vand.u32 %v804, 4294901760
    %v933 = vsub.f32 %v804, %v932
    %v934 = vand.u32 %v933, 4294901760
    %v935 = vsub.f32 %v933, %v934
    %v936 = vand.u32 %v935, 4294901760
    %937 = vmatpush.msra.mxu0 %v936
    %v938 = vand.u32 %v803, 4294901760
    %v939 = vsub.f32 %v803, %v938
    %v940 = vand.u32 %v939, 4294901760
    %v941 = vsub.f32 %v939, %v940
    %v942 = vand.u32 %v941, 4294901760
    %943 = vmatpush.msra.mxu0 %v942
    %v944 = vand.u32 %v802, 4294901760
    %v945 = vsub.f32 %v802, %v944
    %v946 = vand.u32 %v945, 4294901760
    %v947 = vsub.f32 %v945, %v946
    %v948 = vand.u32 %v947, 4294901760
    %949 = vmatpush.msra.mxu0 %v948
    %v950 = vand.u32 %v801, 4294901760
    %v951 = vsub.f32 %v801, %v950
    %v952 = vand.u32 %v951, 4294901760
    %v953 = vsub.f32 %v951, %v952
    %v954 = vand.u32 %v953, 4294901760
    %955 = vmatpush.msra.mxu0 %v954
    %v956 = vand.u32 %v800, 4294901760
    %v957 = vsub.f32 %v800, %v956
    %v958 = vand.u32 %v957, 4294901760
    %v959 = vsub.f32 %v957, %v958
    %v960 = vand.u32 %v959, 4294901760
    %961 = vmatpush.msra.mxu0 %v960
    %v962 = vand.u32 %v799, 4294901760
    %v963 = vsub.f32 %v799, %v962
    %v964 = vand.u32 %v963, 4294901760
    %v965 = vsub.f32 %v963, %v964
    %v966 = vand.u32 %v965, 4294901760
    %967 = vmatpush.msra.mxu0 %v966
    %v968 = vand.u32 %v72, 4294901760
    %969 = vmatmul.f32.gmra.mxu0 %v968
    %v970 = vpop.f32.mrf.mxu0
    %v971 = vadd.f32 %v870, %v970
    %972 = vdwg.mxu0
    %v973 = vand.u32 %v814, 4294901760
    %v974 = vsub.f32 %v814, %v973
    %975 = vmatpush.msra.mxu0 %v974
    %v976 = vand.u32 %v813, 4294901760
    %v977 = vsub.f32 %v813, %v976
    %978 = vmatpush.msra.mxu0 %v977
    %v979 = vand.u32 %v812, 4294901760
    %v980 = vsub.f32 %v812, %v979
    %981 = vmatpush.msra.mxu0 %v980
    %v982 = vand.u32 %v811, 4294901760
    %v983 = vsub.f32 %v811, %v982
    %984 = vmatpush.msra.mxu0 %v983
    %v985 = vand.u32 %v810, 4294901760
    %v986 = vsub.f32 %v810, %v985
    %987 = vmatpush.msra.mxu0 %v986
    %v988 = vand.u32 %v809, 4294901760
    %v989 = vsub.f32 %v809, %v988
    %990 = vmatpush.msra.mxu0 %v989
    %v991 = vand.u32 %v808, 4294901760
    %v992 = vsub.f32 %v808, %v991
    %993 = vmatpush.msra.mxu0 %v992
    %v994 = vand.u32 %v807, 4294901760
    %v995 = vsub.f32 %v807, %v994
    %996 = vmatpush.msra.mxu0 %v995
    %v997 = vand.u32 %v806, 4294901760
    %v998 = vsub.f32 %v806, %v997
    %999 = vmatpush.msra.mxu0 %v998
    %v1000 = vand.u32 %v805, 4294901760
    %v1001 = vsub.f32 %v805, %v1000
    %1002 = vmatpush.msra.mxu0 %v1001
    %v1003 = vand.u32 %v804, 4294901760
    %v1004 = vsub.f32 %v804, %v1003
    %1005 = vmatpush.msra.mxu0 %v1004
    %v1006 = vand.u32 %v803, 4294901760
    %v1007 = vsub.f32 %v803, %v1006
    %1008 = vmatpush.msra.mxu0 %v1007
    %v1009 = vand.u32 %v802, 4294901760
    %v1010 = vsub.f32 %v802, %v1009
    %1011 = vmatpush.msra.mxu0 %v1010
    %v1012 = vand.u32 %v801, 4294901760
    %v1013 = vsub.f32 %v801, %v1012
    %1014 = vmatpush.msra.mxu0 %v1013
    %v1015 = vand.u32 %v800, 4294901760
    %v1016 = vsub.f32 %v800, %v1015
    %1017 = vmatpush.msra.mxu0 %v1016
    %v1018 = vand.u32 %v799, 4294901760
    %v1019 = vsub.f32 %v799, %v1018
    %1020 = vmatpush.msra.mxu0 %v1019
    %v1021 = vand.u32 %v72, 4294901760
    %v1022 = vsub.f32 %v72, %v1021
    %1023 = vmatmul.f32.gmra.mxu0 %v1022
    %v1024 = vpop.f32.mrf.mxu0
    %v1025 = vadd.f32 %v971, %v1024
    %1026 = vdwg.mxu0
    %v1027 = vand.u32 %v814, 4294901760
    %1028 = vmatpush.msra.mxu0 %v1027
    %v1029 = vand.u32 %v813, 4294901760
    %1030 = vmatpush.msra.mxu0 %v1029
    %v1031 = vand.u32 %v812, 4294901760
    %1032 = vmatpush.msra.mxu0 %v1031
    %v1033 = vand.u32 %v811, 4294901760
    %1034 = vmatpush.msra.mxu0 %v1033
    %v1035 = vand.u32 %v810, 4294901760
    %1036 = vmatpush.msra.mxu0 %v1035
    %v1037 = vand.u32 %v809, 4294901760
    %1038 = vmatpush.msra.mxu0 %v1037
    %v1039 = vand.u32 %v808, 4294901760
    %1040 = vmatpush.msra.mxu0 %v1039
    %v1041 = vand.u32 %v807, 4294901760
    %1042 = vmatpush.msra.mxu0 %v1041
    %v1043 = vand.u32 %v806, 4294901760
    %1044 = vmatpush.msra.mxu0 %v1043
    %v1045 = vand.u32 %v805, 4294901760
    %1046 = vmatpush.msra.mxu0 %v1045
    %v1047 = vand.u32 %v804, 4294901760
    %1048 = vmatpush.msra.mxu0 %v1047
    %v1049 = vand.u32 %v803, 4294901760
    %1050 = vmatpush.msra.mxu0 %v1049
    %v1051 = vand.u32 %v802, 4294901760
    %1052 = vmatpush.msra.mxu0 %v1051
    %v1053 = vand.u32 %v801, 4294901760
    %1054 = vmatpush.msra.mxu0 %v1053
    %v1055 = vand.u32 %v800, 4294901760
    %1056 = vmatpush.msra.mxu0 %v1055
    %v1057 = vand.u32 %v799, 4294901760
    %1058 = vmatpush.msra.mxu0 %v1057
    %v1059 = vand.u32 %v72, 4294901760
    %v1060 = vsub.f32 %v72, %v1059
    %v1061 = vand.u32 %v1060, 4294901760
    %1062 = vmatmul.f32.gmra.mxu0 %v1061
    %v1063 = vpop.f32.mrf.mxu0
    %v1064 = vadd.f32 %v1025, %v1063
    %1065 = vdwg.mxu0
    %v1066 = vand.u32 %v814, 4294901760
    %v1067 = vsub.f32 %v814, %v1066
    %v1068 = vand.u32 %v1067, 4294901760
    %1069 = vmatpush.msra.mxu0 %v1068
    %v1070 = vand.u32 %v813, 4294901760
    %v1071 = vsub.f32 %v813, %v1070
    %v1072 = vand.u32 %v1071, 4294901760
    %1073 = vmatpush.msra.mxu0 %v1072
    %v1074 = vand.u32 %v812, 4294901760
    %v1075 = vsub.f32 %v812, %v1074
    %v1076 = vand.u32 %v1075, 4294901760
    %1077 = vmatpush.msra.mxu0 %v1076
    %v1078 = vand.u32 %v811, 4294901760
    %v1079 = vsub.f32 %v811, %v1078
    %v1080 = vand.u32 %v1079, 4294901760
    %1081 = vmatpush.msra.mxu0 %v1080
    %v1082 = vand.u32 %v810, 4294901760
    %v1083 = vsub.f32 %v810, %v1082
    %v1084 = vand.u32 %v1083, 4294901760
    %1085 = vmatpush.msra.mxu0 %v1084
    %v1086 = vand.u32 %v809, 4294901760
    %v1087 = vsub.f32 %v809, %v1086
    %v1088 = vand.u32 %v1087, 4294901760
    %1089 = vmatpush.msra.mxu0 %v1088
    %v1090 = vand.u32 %v808, 4294901760
    %v1091 = vsub.f32 %v808, %v1090
    %v1092 = vand.u32 %v1091, 4294901760
    %1093 = vmatpush.msra.mxu0 %v1092
    %v1094 = vand.u32 %v807, 4294901760
    %v1095 = vsub.f32 %v807, %v1094
    %v1096 = vand.u32 %v1095, 4294901760
    %1097 = vmatpush.msra.mxu0 %v1096
    %v1098 = vand.u32 %v806, 4294901760
    %v1099 = vsub.f32 %v806, %v1098
    %v1100 = vand.u32 %v1099, 4294901760
    %1101 = vmatpush.msra.mxu0 %v1100
    %v1102 = vand.u32 %v805, 4294901760
    %v1103 = vsub.f32 %v805, %v1102
    %v1104 = vand.u32 %v1103, 4294901760
    %1105 = vmatpush.msra.mxu0 %v1104
    %v1106 = vand.u32 %v804, 4294901760
    %v1107 = vsub.f32 %v804, %v1106
    %v1108 = vand.u32 %v1107, 4294901760
    %1109 = vmatpush.msra.mxu0 %v1108
    %v1110 = vand.u32 %v803, 4294901760
    %v1111 = vsub.f32 %v803, %v1110
    %v1112 = vand.u32 %v1111, 4294901760
    %1113 = vmatpush.msra.mxu0 %v1112
    %v1114 = vand.u32 %v802, 4294901760
    %v1115 = vsub.f32 %v802, %v1114
    %v1116 = vand.u32 %v1115, 4294901760
    %1117 = vmatpush.msra.mxu0 %v1116
    %v1118 = vand.u32 %v801, 4294901760
    %v1119 = vsub.f32 %v801, %v1118
    %v1120 = vand.u32 %v1119, 4294901760
    %1121 = vmatpush.msra.mxu0 %v1120
    %v1122 = vand.u32 %v800, 4294901760
    %v1123 = vsub.f32 %v800, %v1122
    %v1124 = vand.u32 %v1123, 4294901760
    %1125 = vmatpush.msra.mxu0 %v1124
    %v1126 = vand.u32 %v799, 4294901760
    %v1127 = vsub.f32 %v799, %v1126
    %v1128 = vand.u32 %v1127, 4294901760
    %1129 = vmatpush.msra.mxu0 %v1128
    %v1130 = vand.u32 %v72, 4294901760
    %1131 = vmatmul.f32.gmra.mxu0 %v1130
    %v1132 = vpop.f32.mrf.mxu0
    %v1133 = vadd.f32 %v1064, %v1132
    %1134 = vdwg.mxu0
    %v1135 = vand.u32 %v814, 4294901760
    %1136 = vmatpush.msra.mxu0 %v1135
    %v1137 = vand.u32 %v813, 4294901760
    %1138 = vmatpush.msra.mxu0 %v1137
    %v1139 = vand.u32 %v812, 4294901760
    %1140 = vmatpush.msra.mxu0 %v1139
    %v1141 = vand.u32 %v811, 4294901760
    %1142 = vmatpush.msra.mxu0 %v1141
    %v1143 = vand.u32 %v810, 4294901760
    %1144 = vmatpush.msra.mxu0 %v1143
    %v1145 = vand.u32 %v809, 4294901760
    %1146 = vmatpush.msra.mxu0 %v1145
    %v1147 = vand.u32 %v808, 4294901760
    %1148 = vmatpush.msra.mxu0 %v1147
    %v1149 = vand.u32 %v807, 4294901760
    %1150 = vmatpush.msra.mxu0 %v1149
    %v1151 = vand.u32 %v806, 4294901760
    %1152 = vmatpush.msra.mxu0 %v1151
    %v1153 = vand.u32 %v805, 4294901760
    %1154 = vmatpush.msra.mxu0 %v1153
    %v1155 = vand.u32 %v804, 4294901760
    %1156 = vmatpush.msra.mxu0 %v1155
    %v1157 = vand.u32 %v803, 4294901760
    %1158 = vmatpush.msra.mxu0 %v1157
    %v1159 = vand.u32 %v802, 4294901760
    %1160 = vmatpush.msra.mxu0 %v1159
    %v1161 = vand.u32 %v801, 4294901760
    %1162 = vmatpush.msra.mxu0 %v1161
    %v1163 = vand.u32 %v800, 4294901760
    %1164 = vmatpush.msra.mxu0 %v1163
    %v1165 = vand.u32 %v799, 4294901760
    %1166 = vmatpush.msra.mxu0 %v1165
    %v1167 = vand.u32 %v72, 4294901760
    %1168 = vmatmul.f32.gmra.mxu0 %v1167
    %v1169 = vpop.f32.mrf.mxu0
    %v1170 = vadd.f32 %v1133, %v1169
    %1171 = vdwg.mxu0
    %v1172 = vand.u32 %v830, 4294901760
    %1173 = vmatpush.msra.mxu0 %v1172
    %v1174 = vand.u32 %v829, 4294901760
    %1175 = vmatpush.msra.mxu0 %v1174
    %v1176 = vand.u32 %v828, 4294901760
    %1177 = vmatpush.msra.mxu0 %v1176
    %v1178 = vand.u32 %v827, 4294901760
    %1179 = vmatpush.msra.mxu0 %v1178
    %v1180 = vand.u32 %v826, 4294901760
    %1181 = vmatpush.msra.mxu0 %v1180
    %v1182 = vand.u32 %v825, 4294901760
    %1183 = vmatpush.msra.mxu0 %v1182
    %v1184 = vand.u32 %v824, 4294901760
    %1185 = vmatpush.msra.mxu0 %v1184
    %v1186 = vand.u32 %v823, 4294901760
    %1187 = vmatpush.msra.mxu0 %v1186
    %v1188 = vand.u32 %v822, 4294901760
    %1189 = vmatpush.msra.mxu0 %v1188
    %v1190 = vand.u32 %v821, 4294901760
    %1191 = vmatpush.msra.mxu0 %v1190
    %v1192 = vand.u32 %v820, 4294901760
    %1193 = vmatpush.msra.mxu0 %v1192
    %v1194 = vand.u32 %v819, 4294901760
    %1195 = vmatpush.msra.mxu0 %v1194
    %v1196 = vand.u32 %v818, 4294901760
    %1197 = vmatpush.msra.mxu0 %v1196
    %v1198 = vand.u32 %v817, 4294901760
    %1199 = vmatpush.msra.mxu0 %v1198
    %v1200 = vand.u32 %v816, 4294901760
    %1201 = vmatpush.msra.mxu0 %v1200
    %v1202 = vand.u32 %v815, 4294901760
    %1203 = vmatpush.msra.mxu0 %v1202
    %v1204 = vand.u32 %v73, 4294901760
    %v1205 = vsub.f32 %v73, %v1204
    %v1206 = vand.u32 %v1205, 4294901760
    %v1207 = vsub.f32 %v1205, %v1206
    %v1208 = vand.u32 %v1207, 4294901760
    %1209 = vmatmul.f32.gmra.mxu0 %v1208
    %v1210 = vpop.f32.mrf.mxu0
    %v1211 = vadd.f32 %v1170, %v1210
    %1212 = vdwg.mxu0
    %v1213 = vand.u32 %v830, 4294901760
    %v1214 = vsub.f32 %v830, %v1213
    %v1215 = vand.u32 %v1214, 4294901760
    %v1216 = vsub.f32 %v1214, %v1215
    %v1217 = vand.u32 %v1216, 4294901760
    %1218 = vmatpush.msra.mxu0 %v1217
    %v1219 = vand.u32 %v829, 4294901760
    %v1220 = vsub.f32 %v829, %v1219
    %v1221 = vand.u32 %v1220, 4294901760
    %v1222 = vsub.f32 %v1220, %v1221
    %v1223 = vand.u32 %v1222, 4294901760
    %1224 = vmatpush.msra.mxu0 %v1223
    %v1225 = vand.u32 %v828, 4294901760
    %v1226 = vsub.f32 %v828, %v1225
    %v1227 = vand.u32 %v1226, 4294901760
    %v1228 = vsub.f32 %v1226, %v1227
    %v1229 = vand.u32 %v1228, 4294901760
    %1230 = vmatpush.msra.mxu0 %v1229
    %v1231 = vand.u32 %v827, 4294901760
    %v1232 = vsub.f32 %v827, %v1231
    %v1233 = vand.u32 %v1232, 4294901760
    %v1234 = vsub.f32 %v1232, %v1233
    %v1235 = vand.u32 %v1234, 4294901760
    %1236 = vmatpush.msra.mxu0 %v1235
    %v1237 = vand.u32 %v826, 4294901760
    %v1238 = vsub.f32 %v826, %v1237
    %v1239 = vand.u32 %v1238, 4294901760
    %v1240 = vsub.f32 %v1238, %v1239
    %v1241 = vand.u32 %v1240, 4294901760
    %1242 = vmatpush.msra.mxu0 %v1241
    %v1243 = vand.u32 %v825, 4294901760
    %v1244 = vsub.f32 %v825, %v1243
    %v1245 = vand.u32 %v1244, 4294901760
    %v1246 = vsub.f32 %v1244, %v1245
    %v1247 = vand.u32 %v1246, 4294901760
    %1248 = vmatpush.msra.mxu0 %v1247
    %v1249 = vand.u32 %v824, 4294901760
    %v1250 = vsub.f32 %v824, %v1249
    %v1251 = vand.u32 %v1250, 4294901760
    %v1252 = vsub.f32 %v1250, %v1251
    %v1253 = vand.u32 %v1252, 4294901760
    %1254 = vmatpush.msra.mxu0 %v1253
    %v1255 = vand.u32 %v823, 4294901760
    %v1256 = vsub.f32 %v823, %v1255
    %v1257 = vand.u32 %v1256, 4294901760
    %v1258 = vsub.f32 %v1256, %v1257
    %v1259 = vand.u32 %v1258, 4294901760
    %1260 = vmatpush.msra.mxu0 %v1259
    %v1261 = vand.u32 %v822, 4294901760
    %v1262 = vsub.f32 %v822, %v1261
    %v1263 = vand.u32 %v1262, 4294901760
    %v1264 = vsub.f32 %v1262, %v1263
    %v1265 = vand.u32 %v1264, 4294901760
    %1266 = vmatpush.msra.mxu0 %v1265
    %v1267 = vand.u32 %v821, 4294901760
    %v1268 = vsub.f32 %v821, %v1267
    %v1269 = vand.u32 %v1268, 4294901760
    %v1270 = vsub.f32 %v1268, %v1269
    %v1271 = vand.u32 %v1270, 4294901760
    %1272 = vmatpush.msra.mxu0 %v1271
    %v1273 = vand.u32 %v820, 4294901760
    %v1274 = vsub.f32 %v820, %v1273
    %v1275 = vand.u32 %v1274, 4294901760
    %v1276 = vsub.f32 %v1274, %v1275
    %v1277 = vand.u32 %v1276, 4294901760
    %1278 = vmatpush.msra.mxu0 %v1277
    %v1279 = vand.u32 %v819, 4294901760
    %v1280 = vsub.f32 %v819, %v1279
    %v1281 = vand.u32 %v1280, 4294901760
    %v1282 = vsub.f32 %v1280, %v1281
    %v1283 = vand.u32 %v1282, 4294901760
    %1284 = vmatpush.msra.mxu0 %v1283
    %v1285 = vand.u32 %v818, 4294901760
    %v1286 = vsub.f32 %v818, %v1285
    %v1287 = vand.u32 %v1286, 4294901760
    %v1288 = vsub.f32 %v1286, %v1287
    %v1289 = vand.u32 %v1288, 4294901760
    %1290 = vmatpush.msra.mxu0 %v1289
    %v1291 = vand.u32 %v817, 4294901760
    %v1292 = vsub.f32 %v817, %v1291
    %v1293 = vand.u32 %v1292, 4294901760
    %v1294 = vsub.f32 %v1292, %v1293
    %v1295 = vand.u32 %v1294, 4294901760
    %1296 = vmatpush.msra.mxu0 %v1295
    %v1297 = vand.u32 %v816, 4294901760
    %v1298 = vsub.f32 %v816, %v1297
    %v1299 = vand.u32 %v1298, 4294901760
    %v1300 = vsub.f32 %v1298, %v1299
    %v1301 = vand.u32 %v1300, 4294901760
    %1302 = vmatpush.msra.mxu0 %v1301
    %v1303 = vand.u32 %v815, 4294901760
    %v1304 = vsub.f32 %v815, %v1303
    %v1305 = vand.u32 %v1304, 4294901760
    %v1306 = vsub.f32 %v1304, %v1305
    %v1307 = vand.u32 %v1306, 4294901760
    %1308 = vmatpush.msra.mxu0 %v1307
    %v1309 = vand.u32 %v73, 4294901760
    %1310 = vmatmul.f32.gmra.mxu0 %v1309
    %v1311 = vpop.f32.mrf.mxu0
    %v1312 = vadd.f32 %v1211, %v1311
    %1313 = vdwg.mxu0
    %v1314 = vand.u32 %v830, 4294901760
    %v1315 = vsub.f32 %v830, %v1314
    %1316 = vmatpush.msra.mxu0 %v1315
    %v1317 = vand.u32 %v829, 4294901760
    %v1318 = vsub.f32 %v829, %v1317
    %1319 = vmatpush.msra.mxu0 %v1318
    %v1320 = vand.u32 %v828, 4294901760
    %v1321 = vsub.f32 %v828, %v1320
    %1322 = vmatpush.msra.mxu0 %v1321
    %v1323 = vand.u32 %v827, 4294901760
    %v1324 = vsub.f32 %v827, %v1323
    %1325 = vmatpush.msra.mxu0 %v1324
    %v1326 = vand.u32 %v826, 4294901760
    %v1327 = vsub.f32 %v826, %v1326
    %1328 = vmatpush.msra.mxu0 %v1327
    %v1329 = vand.u32 %v825, 4294901760
    %v1330 = vsub.f32 %v825, %v1329
    %1331 = vmatpush.msra.mxu0 %v1330
    %v1332 = vand.u32 %v824, 4294901760
    %v1333 = vsub.f32 %v824, %v1332
    %1334 = vmatpush.msra.mxu0 %v1333
    %v1335 = vand.u32 %v823, 4294901760
    %v1336 = vsub.f32 %v823, %v1335
    %1337 = vmatpush.msra.mxu0 %v1336
    %v1338 = vand.u32 %v822, 4294901760
    %v1339 = vsub.f32 %v822, %v1338
    %1340 = vmatpush.msra.mxu0 %v1339
    %v1341 = vand.u32 %v821, 4294901760
    %v1342 = vsub.f32 %v821, %v1341
    %1343 = vmatpush.msra.mxu0 %v1342
    %v1344 = vand.u32 %v820, 4294901760
    %v1345 = vsub.f32 %v820, %v1344
    %1346 = vmatpush.msra.mxu0 %v1345
    %v1347 = vand.u32 %v819, 4294901760
    %v1348 = vsub.f32 %v819, %v1347
    %1349 = vmatpush.msra.mxu0 %v1348
    %v1350 = vand.u32 %v818, 4294901760
    %v1351 = vsub.f32 %v818, %v1350
    %1352 = vmatpush.msra.mxu0 %v1351
    %v1353 = vand.u32 %v817, 4294901760
    %v1354 = vsub.f32 %v817, %v1353
    %1355 = vmatpush.msra.mxu0 %v1354
    %v1356 = vand.u32 %v816, 4294901760
    %v1357 = vsub.f32 %v816, %v1356
    %1358 = vmatpush.msra.mxu0 %v1357
    %v1359 = vand.u32 %v815, 4294901760
    %v1360 = vsub.f32 %v815, %v1359
    %1361 = vmatpush.msra.mxu0 %v1360
    %v1362 = vand.u32 %v73, 4294901760
    %v1363 = vsub.f32 %v73, %v1362
    %1364 = vmatmul.f32.gmra.mxu0 %v1363
    %v1365 = vpop.f32.mrf.mxu0
    %v1366 = vadd.f32 %v1312, %v1365
    %1367 = vdwg.mxu0
    %v1368 = vand.u32 %v830, 4294901760
    %1369 = vmatpush.msra.mxu0 %v1368
    %v1370 = vand.u32 %v829, 4294901760
    %1371 = vmatpush.msra.mxu0 %v1370
    %v1372 = vand.u32 %v828, 4294901760
    %1373 = vmatpush.msra.mxu0 %v1372
    %v1374 = vand.u32 %v827, 4294901760
    %1375 = vmatpush.msra.mxu0 %v1374
    %v1376 = vand.u32 %v826, 4294901760
    %1377 = vmatpush.msra.mxu0 %v1376
    %v1378 = vand.u32 %v825, 4294901760
    %1379 = vmatpush.msra.mxu0 %v1378
    %v1380 = vand.u32 %v824, 4294901760
    %1381 = vmatpush.msra.mxu0 %v1380
    %v1382 = vand.u32 %v823, 4294901760
    %1383 = vmatpush.msra.mxu0 %v1382
    %v1384 = vand.u32 %v822, 4294901760
    %1385 = vmatpush.msra.mxu0 %v1384
    %v1386 = vand.u32 %v821, 4294901760
    %1387 = vmatpush.msra.mxu0 %v1386
    %v1388 = vand.u32 %v820, 4294901760
    %1389 = vmatpush.msra.mxu0 %v1388
    %v1390 = vand.u32 %v819, 4294901760
    %1391 = vmatpush.msra.mxu0 %v1390
    %v1392 = vand.u32 %v818, 4294901760
    %1393 = vmatpush.msra.mxu0 %v1392
    %v1394 = vand.u32 %v817, 4294901760
    %1395 = vmatpush.msra.mxu0 %v1394
    %v1396 = vand.u32 %v816, 4294901760
    %1397 = vmatpush.msra.mxu0 %v1396
    %v1398 = vand.u32 %v815, 4294901760
    %1399 = vmatpush.msra.mxu0 %v1398
    %v1400 = vand.u32 %v73, 4294901760
    %v1401 = vsub.f32 %v73, %v1400
    %v1402 = vand.u32 %v1401, 4294901760
    %1403 = vmatmul.f32.gmra.mxu0 %v1402
    %v1404 = vpop.f32.mrf.mxu0
    %v1405 = vadd.f32 %v1366, %v1404
    %1406 = vdwg.mxu0
    %v1407 = vand.u32 %v830, 4294901760
    %v1408 = vsub.f32 %v830, %v1407
    %v1409 = vand.u32 %v1408, 4294901760
    %1410 = vmatpush.msra.mxu0 %v1409
    %v1411 = vand.u32 %v829, 4294901760
    %v1412 = vsub.f32 %v829, %v1411
    %v1413 = vand.u32 %v1412, 4294901760
    %1414 = vmatpush.msra.mxu0 %v1413
    %v1415 = vand.u32 %v828, 4294901760
    %v1416 = vsub.f32 %v828, %v1415
    %v1417 = vand.u32 %v1416, 4294901760
    %1418 = vmatpush.msra.mxu0 %v1417
    %v1419 = vand.u32 %v827, 4294901760
    %v1420 = vsub.f32 %v827, %v1419
    %v1421 = vand.u32 %v1420, 4294901760
    %1422 = vmatpush.msra.mxu0 %v1421
    %v1423 = vand.u32 %v826, 4294901760
    %v1424 = vsub.f32 %v826, %v1423
    %v1425 = vand.u32 %v1424, 4294901760
    %1426 = vmatpush.msra.mxu0 %v1425
    %v1427 = vand.u32 %v825, 4294901760
    %v1428 = vsub.f32 %v825, %v1427
    %v1429 = vand.u32 %v1428, 4294901760
    %1430 = vmatpush.msra.mxu0 %v1429
    %v1431 = vand.u32 %v824, 4294901760
    %v1432 = vsub.f32 %v824, %v1431
    %v1433 = vand.u32 %v1432, 4294901760
    %1434 = vmatpush.msra.mxu0 %v1433
    %v1435 = vand.u32 %v823, 4294901760
    %v1436 = vsub.f32 %v823, %v1435
    %v1437 = vand.u32 %v1436, 4294901760
    %1438 = vmatpush.msra.mxu0 %v1437
    %v1439 = vand.u32 %v822, 4294901760
    %v1440 = vsub.f32 %v822, %v1439
    %v1441 = vand.u32 %v1440, 4294901760
    %1442 = vmatpush.msra.mxu0 %v1441
    %v1443 = vand.u32 %v821, 4294901760
    %v1444 = vsub.f32 %v821, %v1443
    %v1445 = vand.u32 %v1444, 4294901760
    %1446 = vmatpush.msra.mxu0 %v1445
    %v1447 = vand.u32 %v820, 4294901760
    %v1448 = vsub.f32 %v820, %v1447
    %v1449 = vand.u32 %v1448, 4294901760
    %1450 = vmatpush.msra.mxu0 %v1449
    %v1451 = vand.u32 %v819, 4294901760
    %v1452 = vsub.f32 %v819, %v1451
    %v1453 = vand.u32 %v1452, 4294901760
    %1454 = vmatpush.msra.mxu0 %v1453
    %v1455 = vand.u32 %v818, 4294901760
    %v1456 = vsub.f32 %v818, %v1455
    %v1457 = vand.u32 %v1456, 4294901760
    %1458 = vmatpush.msra.mxu0 %v1457
    %v1459 = vand.u32 %v817, 4294901760
    %v1460 = vsub.f32 %v817, %v1459
    %v1461 = vand.u32 %v1460, 4294901760
    %1462 = vmatpush.msra.mxu0 %v1461
    %v1463 = vand.u32 %v816, 4294901760
    %v1464 = vsub.f32 %v816, %v1463
    %v1465 = vand.u32 %v1464, 4294901760
    %1466 = vmatpush.msra.mxu0 %v1465
    %v1467 = vand.u32 %v815, 4294901760
    %v1468 = vsub.f32 %v815, %v1467
    %v1469 = vand.u32 %v1468, 4294901760
    %1470 = vmatpush.msra.mxu0 %v1469
    %v1471 = vand.u32 %v73, 4294901760
    %1472 = vmatmul.f32.gmra.mxu0 %v1471
    %v1473 = vpop.f32.mrf.mxu0
    %v1474 = vadd.f32 %v1405, %v1473
    %1475 = vdwg.mxu0
    %v1476 = vand.u32 %v830, 4294901760
    %1477 = vmatpush.msra.mxu0 %v1476
    %v1478 = vand.u32 %v829, 4294901760
    %1479 = vmatpush.msra.mxu0 %v1478
    %v1480 = vand.u32 %v828, 4294901760
    %1481 = vmatpush.msra.mxu0 %v1480
    %v1482 = vand.u32 %v827, 4294901760
    %1483 = vmatpush.msra.mxu0 %v1482
    %v1484 = vand.u32 %v826, 4294901760
    %1485 = vmatpush.msra.mxu0 %v1484
    %v1486 = vand.u32 %v825, 4294901760
    %1487 = vmatpush.msra.mxu0 %v1486
    %v1488 = vand.u32 %v824, 4294901760
    %1489 = vmatpush.msra.mxu0 %v1488
    %v1490 = vand.u32 %v823, 4294901760
    %1491 = vmatpush.msra.mxu0 %v1490
    %v1492 = vand.u32 %v822, 4294901760
    %1493 = vmatpush.msra.mxu0 %v1492
    %v1494 = vand.u32 %v821, 4294901760
    %1495 = vmatpush.msra.mxu0 %v1494
    %v1496 = vand.u32 %v820, 4294901760
    %1497 = vmatpush.msra.mxu0 %v1496
    %v1498 = vand.u32 %v819, 4294901760
    %1499 = vmatpush.msra.mxu0 %v1498
    %v1500 = vand.u32 %v818, 4294901760
    %1501 = vmatpush.msra.mxu0 %v1500
    %v1502 = vand.u32 %v817, 4294901760
    %1503 = vmatpush.msra.mxu0 %v1502
    %v1504 = vand.u32 %v816, 4294901760
    %1505 = vmatpush.msra.mxu0 %v1504
    %v1506 = vand.u32 %v815, 4294901760
    %1507 = vmatpush.msra.mxu0 %v1506
    %v1508 = vand.u32 %v73, 4294901760
    %1509 = vmatmul.f32.gmra.mxu0 %v1508
    %v1510 = vpop.f32.mrf.mxu0
    %v1511 = vadd.f32 %v1474, %v1510
    %1512 = vdwg.mxu0
    %v1513 = vsel %vm788, %v1511, 0.0
    %1514 = vadd.xlane.f32.xlu0 %v1513
    %v1515 = vpop.xlane.xlu0 %1514
    %v1516 = vrot.slane %v1515, 4
    %v1517 = vadd.f32 %v1515, %v1516
    %v1518 = vrot.slane %v1517, 2
    %v1519 = vadd.f32 %v1517, %v1518
    %v1520 = vrot.slane %v1519, 1
    %v1521 = vadd.f32 %v1519, %v1520
    %s1522 = vtos %v1521
    %v1523 = vlaneseq
    %v1524 = vshrl.u32 %v1523, 7
    %vm1525 = vcmp.eq.s32.totalorder %v1524, 0
    %vm1526 = vcmp.eq.s32.totalorder %v27, 0
    %vm1527 = vmand %vm1525, %vm1526
    %vm1528 = vcmp.eq.s32.totalorder %v27, 1
    %vm1529 = vmand %vm1525, %vm1528
    %v1530 = vstv %s1522
    %v1531 = vsel %vm1529, %v1530, 0.0
    %v1532 = vstv %s798
    %v1533 = vsel %vm1527, %v1532, %v1531
    %1534 = vst [vmem:[#allocation2] sm:$0xff] %v1533
    // Predicated region
    $region18: #{tpu_custom_call.1} parent=1 // pred_check
      _
    $region19: #{tpu_custom_call.1} parent=1 // pred_check_branch
      %1536 = sbr.rel (0) target = $region21
    $region20: #{tpu_custom_call.1} parent=1 // pred_region
      %1538 = vsyncadd [#allocation3], 0
      %s1540 = sshll.u32 [#allocation2], 4
      %s1541 = int_to_ptr.vmem [resolvable:$true] %s1540
      %s1542 = sshll.u32 %s4, 4
      %s1543 = int_to_ptr.hbm [resolvable:$true] %s1542
      %1545 = dma.vmem_to_hbm [thread:$0]  %s1541, 128, %s1543, [#allocation3]
    $region21: #{tpu_custom_call.1} parent=1 // pred_fallthru
      _
    // Predicated region
    $region22: #{tpu_custom_call.1} parent=1 // pred_check
      _
    $region23: #{tpu_custom_call.1} parent=1 // pred_check_branch
      %1547 = sbr.rel (0) target = $region25
    $region24: #{tpu_custom_call.1} parent=1 // pred_region
      %1549 = dma.done [#allocation3], 128
    $region25: #{tpu_custom_call.1} parent=1 // pred_fallthru
      _
    %1550 = vsyncpa [#allocation3], 1

</llo_original>
